<compile_context>
chip_gen: v5e
topology: v5e:2x2
jax: 0.10.0
libtpu: 0.0.40
codegen_flags: <defaults>
</compile_context>

<pallas_src>
import functools

import numpy as np
import jax
import jax.numpy as jnp
from jax.experimental import pallas as pl
from jax.experimental.pallas import tpu as pltpu


def _hardswish(v):
    # torch: x * hardtanh(x + 3, 0, 6) / 6
    return v * jnp.clip(v + 3.0, 0.0, 6.0) * (1.0 / 6.0)


def bottleneck_csp_kernel(x_ref,
                          wcv1_ref, bcv1_ref,
                          wm1_ref, bm1_ref,
                          wm2_ref, bm2_ref,
                          wcv3_ref, bbn1_ref,
                          wcv2_ref, bbn2_ref,
                          wcv4a_ref, wcv4b_ref, bcv4_ref,
                          mask_ref,
                          o_ref,
                          *, W, L):
    f32 = jnp.float32
    bf16 = jnp.bfloat16

    xb = x_ref[...]                                    # (c1, L) bf16

    def dot(w, a_bf16):
        # bf16 x bf16 -> f32 accumulate on the MXU
        return jnp.dot(w, a_bf16, preferred_element_type=f32)

    # ---- CSP cv1: 1x1 conv (BN scale folded) + shift + Hardswish -----------
    t = _hardswish(dot(wcv1_ref[...], xb) + bcv1_ref[...])            # (c_, L)

    # ---- Bottleneck cv1: 1x1 conv + shift + Hardswish ----------------------
    u = _hardswish(dot(wm1_ref[...], t.astype(bf16)) + bm1_ref[...])  # (c_, L)

    # ---- Bottleneck cv2: 3x3 conv (pad 1) as 9 accumulating taps -----------
    # part_k[:, p] = u[:, p + dh*W + dw] for in-bounds sources within the same
    # image (static lane roll); out-of-bounds / cross-image reads are zeroed
    # by the host-precomputed 0/1 masks.  No stacked operand, no concat, no
    # padded scratch: peak transient VMEM is ~one extra (c_, L) buffer.
    acc3 = None
    k = 0
    for dh in (-1, 0, 1):
        for dw in (-1, 0, 1):
            d = dh * W + dw
            if d == 0:
                part = u
            else:
                part = pltpu.roll(u, shift=(-d) % L, axis=1)
                part = part * mask_ref[k:k + 1, :]
            contrib = dot(wm2_ref[k], part.astype(bf16))              # (c_, L)
            acc3 = contrib if acc3 is None else acc3 + contrib
            k += 1
    v = _hardswish(acc3 + bm2_ref[...])                               # (c_, L)
    mb = t + v                                                        # shortcut

    # ---- y1 = cv3(m(cv1(x))), y2 = cv2(x); BN scale folded, + shift --------
    y1 = dot(wcv3_ref[...], mb.astype(bf16)) + bbn1_ref[...]
    y2 = dot(wcv2_ref[...], xb) + bbn2_ref[...]
    a1 = jnp.maximum(y1, 0.1 * y1)                                    # LeakyReLU 0.1
    a2 = jnp.maximum(y2, 0.1 * y2)

    # ---- cv4: concat removed, split-weight accumulate + BN shift + act -----
    acc = dot(wcv4a_ref[...], a1.astype(bf16)) + dot(wcv4b_ref[...], a2.astype(bf16))
    o_ref[...] = _hardswish(acc + bcv4_ref[...])


def make_shift_masks(H, W, B):
    """(9, B*H*W) 0/1 masks.  mask[k, p] == 1 iff tap k = (dh+1)*3+(dw+1)
    reads an in-bounds pixel of the *same* image at flat lane position p."""
    HW = H * W
    h = np.arange(HW) // W
    w = np.arange(HW) % W
    rows = []
    for dh in (-1, 0, 1):
        for dw in (-1, 0, 1):
            ok = ((h + dh >= 0) & (h + dh < H) &
                  (w + dw >= 0) & (w + dw < W)).astype(np.float32)
            rows.append(np.tile(ok, B))
    return jnp.asarray(np.stack(rows, axis=0))


def prepare_params(P):
    """Fold BN scales into conv weights, cast matmul weights to bf16, split
    cv4's weight (eliminates the concat) and lay wm2 out as 9 (out,in) taps."""
    f32, bf16 = jnp.float32, jnp.bfloat16
    c_ = P["wcv1"].shape[0]
    col = lambda v: v.reshape(-1, 1).astype(f32)

    K = {}
    K["wcv1"] = (P["scv1"][:, None] * P["wcv1"]).astype(bf16)
    K["bcv1"] = col(P["bcv1"])
    K["wm1"] = (P["sm1"][:, None] * P["wm1"]).astype(bf16)
    K["bm1"] = col(P["bm1"])
    wm2 = P["wm2"] * P["sm2"][None, None, :, None]        # (kh, kw, out, in)
    K["wm2"] = wm2.reshape(9, c_, c_).astype(bf16)         # tap k = kh*3 + kw
    K["bm2"] = col(P["bm2"])
    K["wcv3"] = (P["sbn"][:c_, None] * P["wcv3"]).astype(bf16)
    K["bbn1"] = col(P["bbn"][:c_])
    K["wcv2"] = (P["sbn"][c_:, None] * P["wcv2"]).astype(bf16)
    K["bbn2"] = col(P["bbn"][c_:])
    wcv4 = P["scv4"][:, None] * P["wcv4"]                  # (c2, 2*c_)
    K["wcv4a"] = wcv4[:, :c_].astype(bf16)
    K["wcv4b"] = wcv4[:, c_:].astype(bf16)
    K["bcv4"] = col(P["bcv4"])
    return K


def bottleneck_csp(x_nchw, K, *, lane_target=4096):
    N, c1, H, W = x_nchw.shape
    HW = H * W
    c_ = K["wcv1"].shape[0]
    c2 = K["wcv4a"].shape[0]

    # Batch block of whole images per grid step (must divide N); lane extent
    # L = b_blk*HW stays lane-dense (multiple of 128 when HW is).
    b_blk = max(1, min(N, lane_target // HW))
    while N % b_blk:
        b_blk -= 1
    L = b_blk * HW
    n_blocks = N // b_blk

    # Channel-first with the batch folded into the lane axis: (c1, N*HW) bf16.
    x_cf = jnp.transpose(x_nchw.reshape(N, c1, HW), (1, 0, 2)).reshape(c1, N * HW)
    x_cf = x_cf.astype(jnp.bfloat16)
    masks = make_shift_masks(H, W, b_blk)                  # (9, L) f32

    weight_args = [K["wcv1"], K["bcv1"], K["wm1"], K["bm1"], K["wm2"], K["bm2"],
                   K["wcv3"], K["bbn1"], K["wcv2"], K["bbn2"],
                   K["wcv4a"], K["wcv4b"], K["bcv4"], masks]

    def inv_spec(a):
        # Grid-invariant operand: full block, single-buffered (halves its VMEM
        # footprint vs the default double-buffering).
        nd = a.ndim
        return pl.BlockSpec(a.shape, lambda b, nd=nd: (0,) * nd,
                            pipeline_mode=pl.Buffered(1))

    in_specs = [pl.BlockSpec((c1, L), lambda b: (0, b))]
    in_specs += [inv_spec(a) for a in weight_args]
    out_spec = pl.BlockSpec((c2, L), lambda b: (0, b))

    flops = 2 * N * HW * (c_ * c1 + c_ * c_ + 9 * c_ * c_ + c_ * c_
                          + c_ * c1 + c2 * c_ + c2 * c_)
    bytes_accessed = (int(x_cf.size) * 2
                      + sum(int(a.size) * a.dtype.itemsize for a in weight_args)
                      + N * c2 * HW * 4)

    kernel = functools.partial(bottleneck_csp_kernel, W=W, L=L)

    out_cf = pl.pallas_call(
        kernel,
        out_shape=jax.ShapeDtypeStruct((c2, N * HW), jnp.float32),
        grid=(n_blocks,),
        in_specs=in_specs,
        out_specs=out_spec,
        compiler_params=pltpu.CompilerParams(
            dimension_semantics=("parallel",),
            vmem_limit_bytes=48 * 1024 * 1024),
        cost_estimate=pl.CostEstimate(flops=flops, transcendentals=0,
                                      bytes_accessed=bytes_accessed),
    )(x_cf, *weight_args)
    return jnp.transpose(out_cf.reshape(c2, N, HW), (1, 0, 2)).reshape(N, c2, H, W)


def init_params(key, c1, c2, e=0.5):
    """Deterministic synthetic params.  BN (eval mode) folded into scale/shift."""
    c_ = int(c2 * e)
    keys = iter(jax.random.split(key, 32))

    def w(shape, scale=0.2):
        return scale * jax.random.normal(next(keys), shape, jnp.float32)

    def bn(c, eps=1e-5):
        gamma = 1.0 + 0.1 * jax.random.normal(next(keys), (c,), jnp.float32)
        beta = 0.1 * jax.random.normal(next(keys), (c,), jnp.float32)
        mean = 0.1 * jax.random.normal(next(keys), (c,), jnp.float32)
        var = 1.0 + 0.1 * jax.random.uniform(next(keys), (c,), jnp.float32)
        s = gamma / jnp.sqrt(var + eps)
        return s, beta - mean * s

    P = {}
    P["wcv1"] = w((c_, c1));        P["scv1"], P["bcv1"] = bn(c_)
    P["wm1"] = w((c_, c_));         P["sm1"], P["bm1"] = bn(c_)
    P["wm2"] = w((3, 3, c_, c_));   P["sm2"], P["bm2"] = bn(c_)   # (kh,kw,out,in)
    P["wcv3"] = w((c_, c_))
    P["wcv2"] = w((c_, c1))
    P["sbn"], P["bbn"] = bn(2 * c_)
    P["wcv4"] = w((c2, 2 * c_));    P["scv4"], P["bcv4"] = bn(c2)
    return P


def ref_forward(x, P):
    """Pure-JAX reference (NCHW), mirrors the PyTorch module semantics."""
    hi = jax.lax.Precision.HIGHEST

    def hswish(v):
        return v * jnp.clip(v + 3.0, 0.0, 6.0) / 6.0

    def c1x1(w, v):
        return jnp.einsum("oi,nihw->nohw", w, v, precision=hi)

    def cbn(w, s, b, v):
        y = c1x1(w, v)
        return hswish(y * s[None, :, None, None] + b[None, :, None, None])

    t = cbn(P["wcv1"], P["scv1"], P["bcv1"], x)
    u = cbn(P["wm1"], P["sm1"], P["bm1"], t)
    w_oihw = jnp.transpose(P["wm2"], (2, 3, 0, 1))
    conv = jax.lax.conv_general_dilated(
        u, w_oihw, (1, 1), ((1, 1), (1, 1)),
        dimension_numbers=("NCHW", "OIHW", "NCHW"), precision=hi)
    v_ = hswish(conv * P["sm2"][None, :, None, None] + P["bm2"][None, :, None, None])
    mb = t + v_
    y1 = c1x1(P["wcv3"], mb)
    y2 = c1x1(P["wcv2"], x)
    y = jnp.concatenate([y1, y2], axis=1)
    y = y * P["sbn"][None, :, None, None] + P["bbn"][None, :, None, None]
    y = jnp.where(y >= 0.0, y, 0.1 * y)
    return cbn(P["wcv4"], P["scv4"], P["bcv4"], y)


if __name__ == "__main__":
    N, c1, c2, H, W = 2, 16, 16, 16, 16
    key = jax.random.PRNGKey(0)
    kx, kp = jax.random.split(key)
    x = jax.random.normal(kx, (N, c1, H, W), jnp.float32)
    P = init_params(kp, c1, c2)
    K = prepare_params(P)

    out = bottleneck_csp(x, K)
    out = jax.block_until_ready(out)

    ref = ref_forward(x, P)
    err = float(jnp.max(jnp.abs(out - ref)))
    assert out.shape == (N, c2, H, W), out.shape
    # bf16 matmul operands (f32 accumulate) vs f32 reference
    assert err < 5e-2, f"max abs diff vs reference: {err}"
    print("KERNEL_OK")
</pallas_src>

<mosaic_0001>
module attributes {stable_mosaic.version = 11 : i64} {
  func.func @bottleneck_csp_kernel(%arg0: i32, %arg1: memref<16x512xbf16, #tpu.memory_space<vmem>>, %arg2: memref<8x16xbf16, #tpu.memory_space<vmem>>, %arg3: memref<8x1xf32, #tpu.memory_space<vmem>>, %arg4: memref<8x8xbf16, #tpu.memory_space<vmem>>, %arg5: memref<8x1xf32, #tpu.memory_space<vmem>>, %arg6: memref<9x8x8xbf16, #tpu.memory_space<vmem>>, %arg7: memref<8x1xf32, #tpu.memory_space<vmem>>, %arg8: memref<8x8xbf16, #tpu.memory_space<vmem>>, %arg9: memref<8x1xf32, #tpu.memory_space<vmem>>, %arg10: memref<8x16xbf16, #tpu.memory_space<vmem>>, %arg11: memref<8x1xf32, #tpu.memory_space<vmem>>, %arg12: memref<16x8xbf16, #tpu.memory_space<vmem>>, %arg13: memref<16x8xbf16, #tpu.memory_space<vmem>>, %arg14: memref<16x1xf32, #tpu.memory_space<vmem>>, %arg15: memref<9x512xf32, #tpu.memory_space<vmem>>, %arg16: memref<16x512xf32, #tpu.memory_space<vmem>>) attributes {dimension_semantics = [#tpu.dimension_semantics<parallel>], iteration_bounds = array<i64: 1>, scalar_prefetch = 0 : i64, scratch_operands = 0 : i64, tpu.core_type = #tpu.core_type<tc>, window_params = [{transform_indices = @transform_0, window_bounds = array<i64: 16, 512>}, {pipeline_mode = #tpu.pipeline_mode<synchronous>, transform_indices = @transform_1, window_bounds = array<i64: 8, 16>}, {pipeline_mode = #tpu.pipeline_mode<synchronous>, transform_indices = @transform_2, window_bounds = array<i64: 8, 1>}, {pipeline_mode = #tpu.pipeline_mode<synchronous>, transform_indices = @transform_3, window_bounds = array<i64: 8, 8>}, {pipeline_mode = #tpu.pipeline_mode<synchronous>, transform_indices = @transform_4, window_bounds = array<i64: 8, 1>}, {pipeline_mode = #tpu.pipeline_mode<synchronous>, transform_indices = @transform_5, window_bounds = array<i64: 9, 8, 8>}, {pipeline_mode = #tpu.pipeline_mode<synchronous>, transform_indices = @transform_6, window_bounds = array<i64: 8, 1>}, {pipeline_mode = #tpu.pipeline_mode<synchronous>, transform_indices = @transform_7, window_bounds = array<i64: 8, 8>}, {pipeline_mode = #tpu.pipeline_mode<synchronous>, transform_indices = @transform_8, window_bounds = array<i64: 8, 1>}, {pipeline_mode = #tpu.pipeline_mode<synchronous>, transform_indices = @transform_9, window_bounds = array<i64: 8, 16>}, {pipeline_mode = #tpu.pipeline_mode<synchronous>, transform_indices = @transform_10, window_bounds = array<i64: 8, 1>}, {pipeline_mode = #tpu.pipeline_mode<synchronous>, transform_indices = @transform_11, window_bounds = array<i64: 16, 8>}, {pipeline_mode = #tpu.pipeline_mode<synchronous>, transform_indices = @transform_12, window_bounds = array<i64: 16, 8>}, {pipeline_mode = #tpu.pipeline_mode<synchronous>, transform_indices = @transform_13, window_bounds = array<i64: 16, 1>}, {pipeline_mode = #tpu.pipeline_mode<synchronous>, transform_indices = @transform_14, window_bounds = array<i64: 9, 512>}, {transform_indices = @transform_15, window_bounds = array<i64: 16, 512>}]} {
    %c0 = arith.constant 0 : index
    %c0_0 = arith.constant 0 : index
    %0 = vector.load %arg1[%c0, %c0_0] : memref<16x512xbf16, #tpu.memory_space<vmem>>, vector<16x512xbf16>
    %c0_1 = arith.constant 0 : index
    %c0_2 = arith.constant 0 : index
    %1 = vector.load %arg2[%c0_1, %c0_2] : memref<8x16xbf16, #tpu.memory_space<vmem>>, vector<8x16xbf16>
    %cst = arith.constant dense<0.000000e+00> : vector<8x512xf32>
    %2 = tpu.matmul %1, %0, %cst {dimension_numbers = #tpu.dot_dimension_numbers<[1], [0], [0], [1], [0, 0, 1, 1], [], []>} : vector<8x16xbf16>, vector<16x512xbf16>, vector<8x512xf32> -> vector<8x512xf32>
    %c0_3 = arith.constant 0 : index
    %c0_4 = arith.constant 0 : index
    %3 = vector.load %arg3[%c0_3, %c0_4] : memref<8x1xf32, #tpu.memory_space<vmem>>, vector<8x1xf32>
    %4 = vector.broadcast %3 : vector<8x1xf32> to vector<8x512xf32>
    %5 = arith.addf %2, %4 : vector<8x512xf32>
    %cst_5 = arith.constant 3.000000e+00 : f32
    %6 = vector.broadcast %cst_5 : f32 to vector<8x512xf32>
    %7 = arith.addf %5, %6 : vector<8x512xf32>
    %cst_6 = arith.constant 0.000000e+00 : f32
    %cst_7 = arith.constant 6.000000e+00 : f32
    %8 = vector.broadcast %cst_6 : f32 to vector<8x512xf32>
    %9 = arith.maximumf %8, %7 : vector<8x512xf32>
    %10 = vector.broadcast %cst_7 : f32 to vector<8x512xf32>
    %11 = arith.minimumf %10, %9 : vector<8x512xf32>
    %12 = arith.mulf %5, %11 : vector<8x512xf32>
    %cst_8 = arith.constant 0.166666672 : f32
    %13 = vector.broadcast %cst_8 : f32 to vector<8x512xf32>
    %14 = arith.mulf %12, %13 : vector<8x512xf32>
    %c0_9 = arith.constant 0 : index
    %c0_10 = arith.constant 0 : index
    %15 = vector.load %arg4[%c0_9, %c0_10] : memref<8x8xbf16, #tpu.memory_space<vmem>>, vector<8x8xbf16>
    %16 = arith.truncf %14 : vector<8x512xf32> to vector<8x512xbf16>
    %cst_11 = arith.constant dense<0.000000e+00> : vector<8x512xf32>
    %17 = tpu.matmul %15, %16, %cst_11 {dimension_numbers = #tpu.dot_dimension_numbers<[1], [0], [0], [1], [0, 0, 1, 1], [], []>} : vector<8x8xbf16>, vector<8x512xbf16>, vector<8x512xf32> -> vector<8x512xf32>
    %c0_12 = arith.constant 0 : index
    %c0_13 = arith.constant 0 : index
    %18 = vector.load %arg5[%c0_12, %c0_13] : memref<8x1xf32, #tpu.memory_space<vmem>>, vector<8x1xf32>
    %19 = vector.broadcast %18 : vector<8x1xf32> to vector<8x512xf32>
    %20 = arith.addf %17, %19 : vector<8x512xf32>
    %cst_14 = arith.constant 3.000000e+00 : f32
    %21 = vector.broadcast %cst_14 : f32 to vector<8x512xf32>
    %22 = arith.addf %20, %21 : vector<8x512xf32>
    %cst_15 = arith.constant 0.000000e+00 : f32
    %cst_16 = arith.constant 6.000000e+00 : f32
    %23 = vector.broadcast %cst_15 : f32 to vector<8x512xf32>
    %24 = arith.maximumf %23, %22 : vector<8x512xf32>
    %25 = vector.broadcast %cst_16 : f32 to vector<8x512xf32>
    %26 = arith.minimumf %25, %24 : vector<8x512xf32>
    %27 = arith.mulf %20, %26 : vector<8x512xf32>
    %cst_17 = arith.constant 0.166666672 : f32
    %28 = vector.broadcast %cst_17 : f32 to vector<8x512xf32>
    %29 = arith.mulf %27, %28 : vector<8x512xf32>
    %c17_i32 = arith.constant 17 : i32
    %30 = tpu.dynamic_rotate %29 by %c17_i32 dim 1 : vector<8x512xf32>, i32 -> vector<8x512xf32>
    %c0_18 = arith.constant 0 : index
    %c0_19 = arith.constant 0 : index
    %31 = vector.load %arg15[%c0_18, %c0_19] : memref<9x512xf32, #tpu.memory_space<vmem>>, vector<1x512xf32>
    %32 = vector.broadcast %31 : vector<1x512xf32> to vector<8x512xf32>
    %33 = arith.mulf %30, %32 : vector<8x512xf32>
    %c0_20 = arith.constant 0 : index
    %c0_21 = arith.constant 0 : index
    %c0_22 = arith.constant 0 : index
    %34 = vector.load %arg6[%c0_20, %c0_21, %c0_22] : memref<9x8x8xbf16, #tpu.memory_space<vmem>>, vector<1x8x8xbf16>
    %35 = vector.shape_cast %34 : vector<1x8x8xbf16> to vector<8x8xbf16>
    %36 = arith.truncf %33 : vector<8x512xf32> to vector<8x512xbf16>
    %cst_23 = arith.constant dense<0.000000e+00> : vector<8x512xf32>
    %37 = tpu.matmul %35, %36, %cst_23 {dimension_numbers = #tpu.dot_dimension_numbers<[1], [0], [0], [1], [0, 0, 1, 1], [], []>} : vector<8x8xbf16>, vector<8x512xbf16>, vector<8x512xf32> -> vector<8x512xf32>
    %c16_i32 = arith.constant 16 : i32
    %38 = tpu.dynamic_rotate %29 by %c16_i32 dim 1 : vector<8x512xf32>, i32 -> vector<8x512xf32>
    %c1 = arith.constant 1 : index
    %c0_24 = arith.constant 0 : index
    %39 = vector.load %arg15[%c1, %c0_24] : memref<9x512xf32, #tpu.memory_space<vmem>>, vector<1x512xf32>
    %40 = vector.broadcast %39 : vector<1x512xf32> to vector<8x512xf32>
    %41 = arith.mulf %38, %40 : vector<8x512xf32>
    %c1_25 = arith.constant 1 : index
    %c0_26 = arith.constant 0 : index
    %c0_27 = arith.constant 0 : index
    %42 = vector.load %arg6[%c1_25, %c0_26, %c0_27] : memref<9x8x8xbf16, #tpu.memory_space<vmem>>, vector<1x8x8xbf16>
    %43 = vector.shape_cast %42 : vector<1x8x8xbf16> to vector<8x8xbf16>
    %44 = arith.truncf %41 : vector<8x512xf32> to vector<8x512xbf16>
    %cst_28 = arith.constant dense<0.000000e+00> : vector<8x512xf32>
    %45 = tpu.matmul %43, %44, %cst_28 {dimension_numbers = #tpu.dot_dimension_numbers<[1], [0], [0], [1], [0, 0, 1, 1], [], []>} : vector<8x8xbf16>, vector<8x512xbf16>, vector<8x512xf32> -> vector<8x512xf32>
    %46 = arith.addf %37, %45 : vector<8x512xf32>
    %c15_i32 = arith.constant 15 : i32
    %47 = tpu.dynamic_rotate %29 by %c15_i32 dim 1 : vector<8x512xf32>, i32 -> vector<8x512xf32>
    %c2 = arith.constant 2 : index
    %c0_29 = arith.constant 0 : index
    %48 = vector.load %arg15[%c2, %c0_29] : memref<9x512xf32, #tpu.memory_space<vmem>>, vector<1x512xf32>
    %49 = vector.broadcast %48 : vector<1x512xf32> to vector<8x512xf32>
    %50 = arith.mulf %47, %49 : vector<8x512xf32>
    %c2_30 = arith.constant 2 : index
    %c0_31 = arith.constant 0 : index
    %c0_32 = arith.constant 0 : index
    %51 = vector.load %arg6[%c2_30, %c0_31, %c0_32] : memref<9x8x8xbf16, #tpu.memory_space<vmem>>, vector<1x8x8xbf16>
    %52 = vector.shape_cast %51 : vector<1x8x8xbf16> to vector<8x8xbf16>
    %53 = arith.truncf %50 : vector<8x512xf32> to vector<8x512xbf16>
    %cst_33 = arith.constant dense<0.000000e+00> : vector<8x512xf32>
    %54 = tpu.matmul %52, %53, %cst_33 {dimension_numbers = #tpu.dot_dimension_numbers<[1], [0], [0], [1], [0, 0, 1, 1], [], []>} : vector<8x8xbf16>, vector<8x512xbf16>, vector<8x512xf32> -> vector<8x512xf32>
    %55 = arith.addf %46, %54 : vector<8x512xf32>
    %c1_i32 = arith.constant 1 : i32
    %56 = tpu.dynamic_rotate %29 by %c1_i32 dim 1 : vector<8x512xf32>, i32 -> vector<8x512xf32>
    %c3 = arith.constant 3 : index
    %c0_34 = arith.constant 0 : index
    %57 = vector.load %arg15[%c3, %c0_34] : memref<9x512xf32, #tpu.memory_space<vmem>>, vector<1x512xf32>
    %58 = vector.broadcast %57 : vector<1x512xf32> to vector<8x512xf32>
    %59 = arith.mulf %56, %58 : vector<8x512xf32>
    %c3_35 = arith.constant 3 : index
    %c0_36 = arith.constant 0 : index
    %c0_37 = arith.constant 0 : index
    %60 = vector.load %arg6[%c3_35, %c0_36, %c0_37] : memref<9x8x8xbf16, #tpu.memory_space<vmem>>, vector<1x8x8xbf16>
    %61 = vector.shape_cast %60 : vector<1x8x8xbf16> to vector<8x8xbf16>
    %62 = arith.truncf %59 : vector<8x512xf32> to vector<8x512xbf16>
    %cst_38 = arith.constant dense<0.000000e+00> : vector<8x512xf32>
    %63 = tpu.matmul %61, %62, %cst_38 {dimension_numbers = #tpu.dot_dimension_numbers<[1], [0], [0], [1], [0, 0, 1, 1], [], []>} : vector<8x8xbf16>, vector<8x512xbf16>, vector<8x512xf32> -> vector<8x512xf32>
    %64 = arith.addf %55, %63 : vector<8x512xf32>
    %c4 = arith.constant 4 : index
    %c0_39 = arith.constant 0 : index
    %c0_40 = arith.constant 0 : index
    %65 = vector.load %arg6[%c4, %c0_39, %c0_40] : memref<9x8x8xbf16, #tpu.memory_space<vmem>>, vector<1x8x8xbf16>
    %66 = vector.shape_cast %65 : vector<1x8x8xbf16> to vector<8x8xbf16>
    %67 = arith.truncf %29 : vector<8x512xf32> to vector<8x512xbf16>
    %cst_41 = arith.constant dense<0.000000e+00> : vector<8x512xf32>
    %68 = tpu.matmul %66, %67, %cst_41 {dimension_numbers = #tpu.dot_dimension_numbers<[1], [0], [0], [1], [0, 0, 1, 1], [], []>} : vector<8x8xbf16>, vector<8x512xbf16>, vector<8x512xf32> -> vector<8x512xf32>
    %69 = arith.addf %64, %68 : vector<8x512xf32>
    %c511_i32 = arith.constant 511 : i32
    %70 = tpu.dynamic_rotate %29 by %c511_i32 dim 1 : vector<8x512xf32>, i32 -> vector<8x512xf32>
    %c5 = arith.constant 5 : index
    %c0_42 = arith.constant 0 : index
    %71 = vector.load %arg15[%c5, %c0_42] : memref<9x512xf32, #tpu.memory_space<vmem>>, vector<1x512xf32>
    %72 = vector.broadcast %71 : vector<1x512xf32> to vector<8x512xf32>
    %73 = arith.mulf %70, %72 : vector<8x512xf32>
    %c5_43 = arith.constant 5 : index
    %c0_44 = arith.constant 0 : index
    %c0_45 = arith.constant 0 : index
    %74 = vector.load %arg6[%c5_43, %c0_44, %c0_45] : memref<9x8x8xbf16, #tpu.memory_space<vmem>>, vector<1x8x8xbf16>
    %75 = vector.shape_cast %74 : vector<1x8x8xbf16> to vector<8x8xbf16>
    %76 = arith.truncf %73 : vector<8x512xf32> to vector<8x512xbf16>
    %cst_46 = arith.constant dense<0.000000e+00> : vector<8x512xf32>
    %77 = tpu.matmul %75, %76, %cst_46 {dimension_numbers = #tpu.dot_dimension_numbers<[1], [0], [0], [1], [0, 0, 1, 1], [], []>} : vector<8x8xbf16>, vector<8x512xbf16>, vector<8x512xf32> -> vector<8x512xf32>
    %78 = arith.addf %69, %77 : vector<8x512xf32>
    %c497_i32 = arith.constant 497 : i32
    %79 = tpu.dynamic_rotate %29 by %c497_i32 dim 1 : vector<8x512xf32>, i32 -> vector<8x512xf32>
    %c6 = arith.constant 6 : index
    %c0_47 = arith.constant 0 : index
    %80 = vector.load %arg15[%c6, %c0_47] : memref<9x512xf32, #tpu.memory_space<vmem>>, vector<1x512xf32>
    %81 = vector.broadcast %80 : vector<1x512xf32> to vector<8x512xf32>
    %82 = arith.mulf %79, %81 : vector<8x512xf32>
    %c6_48 = arith.constant 6 : index
    %c0_49 = arith.constant 0 : index
    %c0_50 = arith.constant 0 : index
    %83 = vector.load %arg6[%c6_48, %c0_49, %c0_50] : memref<9x8x8xbf16, #tpu.memory_space<vmem>>, vector<1x8x8xbf16>
    %84 = vector.shape_cast %83 : vector<1x8x8xbf16> to vector<8x8xbf16>
    %85 = arith.truncf %82 : vector<8x512xf32> to vector<8x512xbf16>
    %cst_51 = arith.constant dense<0.000000e+00> : vector<8x512xf32>
    %86 = tpu.matmul %84, %85, %cst_51 {dimension_numbers = #tpu.dot_dimension_numbers<[1], [0], [0], [1], [0, 0, 1, 1], [], []>} : vector<8x8xbf16>, vector<8x512xbf16>, vector<8x512xf32> -> vector<8x512xf32>
    %87 = arith.addf %78, %86 : vector<8x512xf32>
    %c496_i32 = arith.constant 496 : i32
    %88 = tpu.dynamic_rotate %29 by %c496_i32 dim 1 : vector<8x512xf32>, i32 -> vector<8x512xf32>
    %c7 = arith.constant 7 : index
    %c0_52 = arith.constant 0 : index
    %89 = vector.load %arg15[%c7, %c0_52] : memref<9x512xf32, #tpu.memory_space<vmem>>, vector<1x512xf32>
    %90 = vector.broadcast %89 : vector<1x512xf32> to vector<8x512xf32>
    %91 = arith.mulf %88, %90 : vector<8x512xf32>
    %c7_53 = arith.constant 7 : index
    %c0_54 = arith.constant 0 : index
    %c0_55 = arith.constant 0 : index
    %92 = vector.load %arg6[%c7_53, %c0_54, %c0_55] : memref<9x8x8xbf16, #tpu.memory_space<vmem>>, vector<1x8x8xbf16>
    %93 = vector.shape_cast %92 : vector<1x8x8xbf16> to vector<8x8xbf16>
    %94 = arith.truncf %91 : vector<8x512xf32> to vector<8x512xbf16>
    %cst_56 = arith.constant dense<0.000000e+00> : vector<8x512xf32>
    %95 = tpu.matmul %93, %94, %cst_56 {dimension_numbers = #tpu.dot_dimension_numbers<[1], [0], [0], [1], [0, 0, 1, 1], [], []>} : vector<8x8xbf16>, vector<8x512xbf16>, vector<8x512xf32> -> vector<8x512xf32>
    %96 = arith.addf %87, %95 : vector<8x512xf32>
    %c495_i32 = arith.constant 495 : i32
    %97 = tpu.dynamic_rotate %29 by %c495_i32 dim 1 : vector<8x512xf32>, i32 -> vector<8x512xf32>
    %c8 = arith.constant 8 : index
    %c0_57 = arith.constant 0 : index
    %98 = vector.load %arg15[%c8, %c0_57] : memref<9x512xf32, #tpu.memory_space<vmem>>, vector<1x512xf32>
    %99 = vector.broadcast %98 : vector<1x512xf32> to vector<8x512xf32>
    %100 = arith.mulf %97, %99 : vector<8x512xf32>
    %c8_58 = arith.constant 8 : index
    %c0_59 = arith.constant 0 : index
    %c0_60 = arith.constant 0 : index
    %101 = vector.load %arg6[%c8_58, %c0_59, %c0_60] : memref<9x8x8xbf16, #tpu.memory_space<vmem>>, vector<1x8x8xbf16>
    %102 = vector.shape_cast %101 : vector<1x8x8xbf16> to vector<8x8xbf16>
    %103 = arith.truncf %100 : vector<8x512xf32> to vector<8x512xbf16>
    %cst_61 = arith.constant dense<0.000000e+00> : vector<8x512xf32>
    %104 = tpu.matmul %102, %103, %cst_61 {dimension_numbers = #tpu.dot_dimension_numbers<[1], [0], [0], [1], [0, 0, 1, 1], [], []>} : vector<8x8xbf16>, vector<8x512xbf16>, vector<8x512xf32> -> vector<8x512xf32>
    %105 = arith.addf %96, %104 : vector<8x512xf32>
    %c0_62 = arith.constant 0 : index
    %c0_63 = arith.constant 0 : index
    %106 = vector.load %arg7[%c0_62, %c0_63] : memref<8x1xf32, #tpu.memory_space<vmem>>, vector<8x1xf32>
    %107 = vector.broadcast %106 : vector<8x1xf32> to vector<8x512xf32>
    %108 = arith.addf %105, %107 : vector<8x512xf32>
    %cst_64 = arith.constant 3.000000e+00 : f32
    %109 = vector.broadcast %cst_64 : f32 to vector<8x512xf32>
    %110 = arith.addf %108, %109 : vector<8x512xf32>
    %cst_65 = arith.constant 0.000000e+00 : f32
    %cst_66 = arith.constant 6.000000e+00 : f32
    %111 = vector.broadcast %cst_65 : f32 to vector<8x512xf32>
    %112 = arith.maximumf %111, %110 : vector<8x512xf32>
    %113 = vector.broadcast %cst_66 : f32 to vector<8x512xf32>
    %114 = arith.minimumf %113, %112 : vector<8x512xf32>
    %115 = arith.mulf %108, %114 : vector<8x512xf32>
    %cst_67 = arith.constant 0.166666672 : f32
    %116 = vector.broadcast %cst_67 : f32 to vector<8x512xf32>
    %117 = arith.mulf %115, %116 : vector<8x512xf32>
    %118 = arith.addf %14, %117 : vector<8x512xf32>
    %c0_68 = arith.constant 0 : index
    %c0_69 = arith.constant 0 : index
    %119 = vector.load %arg8[%c0_68, %c0_69] : memref<8x8xbf16, #tpu.memory_space<vmem>>, vector<8x8xbf16>
    %120 = arith.truncf %118 : vector<8x512xf32> to vector<8x512xbf16>
    %cst_70 = arith.constant dense<0.000000e+00> : vector<8x512xf32>
    %121 = tpu.matmul %119, %120, %cst_70 {dimension_numbers = #tpu.dot_dimension_numbers<[1], [0], [0], [1], [0, 0, 1, 1], [], []>} : vector<8x8xbf16>, vector<8x512xbf16>, vector<8x512xf32> -> vector<8x512xf32>
    %c0_71 = arith.constant 0 : index
    %c0_72 = arith.constant 0 : index
    %122 = vector.load %arg9[%c0_71, %c0_72] : memref<8x1xf32, #tpu.memory_space<vmem>>, vector<8x1xf32>
    %123 = vector.broadcast %122 : vector<8x1xf32> to vector<8x512xf32>
    %124 = arith.addf %121, %123 : vector<8x512xf32>
    %c0_73 = arith.constant 0 : index
    %c0_74 = arith.constant 0 : index
    %125 = vector.load %arg10[%c0_73, %c0_74] : memref<8x16xbf16, #tpu.memory_space<vmem>>, vector<8x16xbf16>
    %cst_75 = arith.constant dense<0.000000e+00> : vector<8x512xf32>
    %126 = tpu.matmul %125, %0, %cst_75 {dimension_numbers = #tpu.dot_dimension_numbers<[1], [0], [0], [1], [0, 0, 1, 1], [], []>} : vector<8x16xbf16>, vector<16x512xbf16>, vector<8x512xf32> -> vector<8x512xf32>
    %c0_76 = arith.constant 0 : index
    %c0_77 = arith.constant 0 : index
    %127 = vector.load %arg11[%c0_76, %c0_77] : memref<8x1xf32, #tpu.memory_space<vmem>>, vector<8x1xf32>
    %128 = vector.broadcast %127 : vector<8x1xf32> to vector<8x512xf32>
    %129 = arith.addf %126, %128 : vector<8x512xf32>
    %cst_78 = arith.constant 1.000000e-01 : f32
    %130 = vector.broadcast %cst_78 : f32 to vector<8x512xf32>
    %131 = arith.mulf %130, %124 : vector<8x512xf32>
    %132 = arith.maximumf %124, %131 : vector<8x512xf32>
    %cst_79 = arith.constant 1.000000e-01 : f32
    %133 = vector.broadcast %cst_79 : f32 to vector<8x512xf32>
    %134 = arith.mulf %133, %129 : vector<8x512xf32>
    %135 = arith.maximumf %129, %134 : vector<8x512xf32>
    %c0_80 = arith.constant 0 : index
    %c0_81 = arith.constant 0 : index
    %136 = vector.load %arg12[%c0_80, %c0_81] : memref<16x8xbf16, #tpu.memory_space<vmem>>, vector<16x8xbf16>
    %137 = arith.truncf %132 : vector<8x512xf32> to vector<8x512xbf16>
    %cst_82 = arith.constant dense<0.000000e+00> : vector<16x512xf32>
    %138 = tpu.matmul %136, %137, %cst_82 {dimension_numbers = #tpu.dot_dimension_numbers<[1], [0], [0], [1], [0, 0, 1, 1], [], []>} : vector<16x8xbf16>, vector<8x512xbf16>, vector<16x512xf32> -> vector<16x512xf32>
    %c0_83 = arith.constant 0 : index
    %c0_84 = arith.constant 0 : index
    %139 = vector.load %arg13[%c0_83, %c0_84] : memref<16x8xbf16, #tpu.memory_space<vmem>>, vector<16x8xbf16>
    %140 = arith.truncf %135 : vector<8x512xf32> to vector<8x512xbf16>
    %cst_85 = arith.constant dense<0.000000e+00> : vector<16x512xf32>
    %141 = tpu.matmul %139, %140, %cst_85 {dimension_numbers = #tpu.dot_dimension_numbers<[1], [0], [0], [1], [0, 0, 1, 1], [], []>} : vector<16x8xbf16>, vector<8x512xbf16>, vector<16x512xf32> -> vector<16x512xf32>
    %142 = arith.addf %138, %141 : vector<16x512xf32>
    %c0_86 = arith.constant 0 : index
    %c0_87 = arith.constant 0 : index
    %143 = vector.load %arg14[%c0_86, %c0_87] : memref<16x1xf32, #tpu.memory_space<vmem>>, vector<16x1xf32>
    %144 = vector.broadcast %143 : vector<16x1xf32> to vector<16x512xf32>
    %145 = arith.addf %142, %144 : vector<16x512xf32>
    %cst_88 = arith.constant 3.000000e+00 : f32
    %146 = vector.broadcast %cst_88 : f32 to vector<16x512xf32>
    %147 = arith.addf %145, %146 : vector<16x512xf32>
    %cst_89 = arith.constant 0.000000e+00 : f32
    %cst_90 = arith.constant 6.000000e+00 : f32
    %148 = vector.broadcast %cst_89 : f32 to vector<16x512xf32>
    %149 = arith.maximumf %148, %147 : vector<16x512xf32>
    %150 = vector.broadcast %cst_90 : f32 to vector<16x512xf32>
    %151 = arith.minimumf %150, %149 : vector<16x512xf32>
    %152 = arith.mulf %145, %151 : vector<16x512xf32>
    %cst_91 = arith.constant 0.166666672 : f32
    %153 = vector.broadcast %cst_91 : f32 to vector<16x512xf32>
    %154 = arith.mulf %152, %153 : vector<16x512xf32>
    %c0_92 = arith.constant 0 : index
    %c0_93 = arith.constant 0 : index
    %155 = vector.load %arg16[%c0_92, %c0_93] : memref<16x512xf32, #tpu.memory_space<vmem>>, vector<16x512xf32>
    tpu.vector_store %arg16[%c0_92, %c0_93], %154 {strides = array<i32>} : memref<16x512xf32, #tpu.memory_space<vmem>>, vector<16x512xf32>,
    return
  }
  func.func @transform_0(%arg0: i32) -> (i32, i32) {
    %c0_i32 = arith.constant 0 : i32
    %c0_i32_0 = arith.constant 0 : i32
    return %c0_i32, %arg0 : i32, i32
  }
  func.func @transform_1(%arg0: i32) -> (i32, i32) {
    %c0_i32 = arith.constant 0 : i32
    %c0_i32_0 = arith.constant 0 : i32
    %c0_i32_1 = arith.constant 0 : i32
    return %c0_i32, %c0_i32_0 : i32, i32
  }
  func.func @transform_2(%arg0: i32) -> (i32, i32) {
    %c0_i32 = arith.constant 0 : i32
    %c0_i32_0 = arith.constant 0 : i32
    %c0_i32_1 = arith.constant 0 : i32
    return %c0_i32, %c0_i32_0 : i32, i32
  }
  func.func @transform_3(%arg0: i32) -> (i32, i32) {
    %c0_i32 = arith.constant 0 : i32
    %c0_i32_0 = arith.constant 0 : i32
    %c0_i32_1 = arith.constant 0 : i32
    return %c0_i32, %c0_i32_0 : i32, i32
  }
  func.func @transform_4(%arg0: i32) -> (i32, i32) {
    %c0_i32 = arith.constant 0 : i32
    %c0_i32_0 = arith.constant 0 : i32
    %c0_i32_1 = arith.constant 0 : i32
    return %c0_i32, %c0_i32_0 : i32, i32
  }
  func.func @transform_5(%arg0: i32) -> (i32, i32, i32) {
    %c0_i32 = arith.constant 0 : i32
    %c0_i32_0 = arith.constant 0 : i32
    %c0_i32_1 = arith.constant 0 : i32
    %c0_i32_2 = arith.constant 0 : i32
    return %c0_i32, %c0_i32_0, %c0_i32_1 : i32, i32, i32
  }
  func.func @transform_6(%arg0: i32) -> (i32, i32) {
    %c0_i32 = arith.constant 0 : i32
    %c0_i32_0 = arith.constant 0 : i32
    %c0_i32_1 = arith.constant 0 : i32
    return %c0_i32, %c0_i32_0 : i32, i32
  }
  func.func @transform_7(%arg0: i32) -> (i32, i32) {
    %c0_i32 = arith.constant 0 : i32
    %c0_i32_0 = arith.constant 0 : i32
    %c0_i32_1 = arith.constant 0 : i32
    return %c0_i32, %c0_i32_0 : i32, i32
  }
  func.func @transform_8(%arg0: i32) -> (i32, i32) {
    %c0_i32 = arith.constant 0 : i32
    %c0_i32_0 = arith.constant 0 : i32
    %c0_i32_1 = arith.constant 0 : i32
    return %c0_i32, %c0_i32_0 : i32, i32
  }
  func.func @transform_9(%arg0: i32) -> (i32, i32) {
    %c0_i32 = arith.constant 0 : i32
    %c0_i32_0 = arith.constant 0 : i32
    %c0_i32_1 = arith.constant 0 : i32
    return %c0_i32, %c0_i32_0 : i32, i32
  }
  func.func @transform_10(%arg0: i32) -> (i32, i32) {
    %c0_i32 = arith.constant 0 : i32
    %c0_i32_0 = arith.constant 0 : i32
    %c0_i32_1 = arith.constant 0 : i32
    return %c0_i32, %c0_i32_0 : i32, i32
  }
  func.func @transform_11(%arg0: i32) -> (i32, i32) {
    %c0_i32 = arith.constant 0 : i32
    %c0_i32_0 = arith.constant 0 : i32
    %c0_i32_1 = arith.constant 0 : i32
    return %c0_i32, %c0_i32_0 : i32, i32
  }
  func.func @transform_12(%arg0: i32) -> (i32, i32) {
    %c0_i32 = arith.constant 0 : i32
    %c0_i32_0 = arith.constant 0 : i32
    %c0_i32_1 = arith.constant 0 : i32
    return %c0_i32, %c0_i32_0 : i32, i32
  }
  func.func @transform_13(%arg0: i32) -> (i32, i32) {
    %c0_i32 = arith.constant 0 : i32
    %c0_i32_0 = arith.constant 0 : i32
    %c0_i32_1 = arith.constant 0 : i32
    return %c0_i32, %c0_i32_0 : i32, i32
  }
  func.func @transform_14(%arg0: i32) -> (i32, i32) {
    %c0_i32 = arith.constant 0 : i32
    %c0_i32_0 = arith.constant 0 : i32
    %c0_i32_1 = arith.constant 0 : i32
    return %c0_i32, %c0_i32_0 : i32, i32
  }
  func.func @transform_15(%arg0: i32) -> (i32, i32) {
    %c0_i32 = arith.constant 0 : i32
    %c0_i32_0 = arith.constant 0 : i32
    return %c0_i32, %arg0 : i32, i32
  }
}

</mosaic_0001>

<llo_original>
// kernel: tpu_custom_call.1
$region0: #{tpu_custom_call.1}
  #allocation0 [shape = 'u32[]', space=smem, size = 0x4, offset = 0x4, fixed_abs, tag = 'smem constant byte address 0x4 - core index']
  #allocation1 [shape = 'u32[72,128]{1,0:T(1,128)}', space=vmem, size = 0x9000, scoped, tag = 'internal scratch']
  %s0 = inlined_call_operand.vmem [shape: bf16[16,512], index: 0, kind: input, shape index: {}]
  %s1 = inlined_call_operand.vmem [shape: bf16[8,16], index: 1, kind: input, shape index: {}]
  %s2 = inlined_call_operand.vmem [shape: f32[8,1], index: 2, kind: input, shape index: {}]
  %s3 = inlined_call_operand.vmem [shape: bf16[8,8], index: 3, kind: input, shape index: {}]
  %s4 = inlined_call_operand.vmem [shape: f32[8,1], index: 4, kind: input, shape index: {}]
  %s5 = inlined_call_operand.vmem [shape: bf16[9,8,8], index: 5, kind: input, shape index: {}]
  %s6 = inlined_call_operand.vmem [shape: f32[8,1], index: 6, kind: input, shape index: {}]
  %s7 = inlined_call_operand.vmem [shape: bf16[8,8], index: 7, kind: input, shape index: {}]
  %s8 = inlined_call_operand.vmem [shape: f32[8,1], index: 8, kind: input, shape index: {}]
  %s9 = inlined_call_operand.vmem [shape: bf16[8,16], index: 9, kind: input, shape index: {}]
  %s10 = inlined_call_operand.vmem [shape: f32[8,1], index: 10, kind: input, shape index: {}]
  %s11 = inlined_call_operand.vmem [shape: bf16[16,8], index: 11, kind: input, shape index: {}]
  %s12 = inlined_call_operand.vmem [shape: bf16[16,8], index: 12, kind: input, shape index: {}]
  %s13 = inlined_call_operand.vmem [shape: f32[16,1], index: 13, kind: input, shape index: {}]
  %s14 = inlined_call_operand.vmem [shape: f32[9,512], index: 14, kind: input, shape index: {}]
  %s15 = inlined_call_operand.hbm [shape: f32[16,512], index: 15, kind: output, shape index: {}]
  %s16 = sld [smem:[#allocation0]]
  $region70: #{tpu_custom_call.1} parent=0
    _
  %s18 = ssub.s32 1, %s16
  %s19 = scalar_select 0, %s18, %s16
  $region1: #{tpu_custom_call.1} parent=0
    #allocation2 [shape = 'u8[32768]{0}', space=vmem, size = 0x8000, scoped, tag = 'output window, operand 0, single buffered']
    #allocation3 [shape = 's32[1]{0}', space=sflag, size = 0x4, scoped, tag = 'scoped memory for tpu_custom_call.1']
    %20 = vsyncpa [#allocation3], 0
    // Predicated region
    $region2: #{tpu_custom_call.1} parent=1 // pred_check
      _
    $region3: #{tpu_custom_call.1} parent=1 // pred_check_branch
      %22 = sbr.rel (0) target = $region5
    $region4: #{tpu_custom_call.1} parent=1 // pred_region
      _
    $region5: #{tpu_custom_call.1} parent=1 // pred_fallthru
      _
    // Predicated region
    $region6: #{tpu_custom_call.1} parent=1 // pred_check
      _
    $region7: #{tpu_custom_call.1} parent=1 // pred_check_branch
      %24 = sbr.rel (0) target = $region9
    $region8: #{tpu_custom_call.1} parent=1 // pred_region
      _
    $region9: #{tpu_custom_call.1} parent=1 // pred_fallthru
      _
    // Predicated region
    $region10: #{tpu_custom_call.1} parent=1 // pred_check
      _
    $region11: #{tpu_custom_call.1} parent=1 // pred_check_branch
      %26 = sbr.rel (0) target = $region13
    $region12: #{tpu_custom_call.1} parent=1 // pred_region
      _
    $region13: #{tpu_custom_call.1} parent=1 // pred_fallthru
      _
    // Predicated region
    $region14: #{tpu_custom_call.1} parent=1 // pred_check
      _
    $region15: #{tpu_custom_call.1} parent=1 // pred_check_branch
      %28 = sbr.rel (0) target = $region17
    $region16: #{tpu_custom_call.1} parent=1 // pred_region
      _
    $region17: #{tpu_custom_call.1} parent=1 // pred_fallthru
      _
    // Predicated region
    $region18: #{tpu_custom_call.1} parent=1 // pred_check
      _
    $region19: #{tpu_custom_call.1} parent=1 // pred_check_branch
      %30 = sbr.rel (0) target = $region21
    $region20: #{tpu_custom_call.1} parent=1 // pred_region
      _
    $region21: #{tpu_custom_call.1} parent=1 // pred_fallthru
      _
    // Predicated region
    $region22: #{tpu_custom_call.1} parent=1 // pred_check
      _
    $region23: #{tpu_custom_call.1} parent=1 // pred_check_branch
      %32 = sbr.rel (0) target = $region25
    $region24: #{tpu_custom_call.1} parent=1 // pred_region
      _
    $region25: #{tpu_custom_call.1} parent=1 // pred_fallthru
      _
    // Predicated region
    $region26: #{tpu_custom_call.1} parent=1 // pred_check
      _
    $region27: #{tpu_custom_call.1} parent=1 // pred_check_branch
      %34 = sbr.rel (0) target = $region29
    $region28: #{tpu_custom_call.1} parent=1 // pred_region
      _
    $region29: #{tpu_custom_call.1} parent=1 // pred_fallthru
      _
    // Predicated region
    $region30: #{tpu_custom_call.1} parent=1 // pred_check
      _
    $region31: #{tpu_custom_call.1} parent=1 // pred_check_branch
      %36 = sbr.rel (0) target = $region33
    $region32: #{tpu_custom_call.1} parent=1 // pred_region
      _
    $region33: #{tpu_custom_call.1} parent=1 // pred_fallthru
      _
    // Predicated region
    $region34: #{tpu_custom_call.1} parent=1 // pred_check
      _
    $region35: #{tpu_custom_call.1} parent=1 // pred_check_branch
      %38 = sbr.rel (0) target = $region37
    $region36: #{tpu_custom_call.1} parent=1 // pred_region
      _
    $region37: #{tpu_custom_call.1} parent=1 // pred_fallthru
      _
    // Predicated region
    $region38: #{tpu_custom_call.1} parent=1 // pred_check
      _
    $region39: #{tpu_custom_call.1} parent=1 // pred_check_branch
      %40 = sbr.rel (0) target = $region41
    $region40: #{tpu_custom_call.1} parent=1 // pred_region
      _
    $region41: #{tpu_custom_call.1} parent=1 // pred_fallthru
      _
    // Predicated region
    $region42: #{tpu_custom_call.1} parent=1 // pred_check
      _
    $region43: #{tpu_custom_call.1} parent=1 // pred_check_branch
      %42 = sbr.rel (0) target = $region45
    $region44: #{tpu_custom_call.1} parent=1 // pred_region
      _
    $region45: #{tpu_custom_call.1} parent=1 // pred_fallthru
      _
    // Predicated region
    $region46: #{tpu_custom_call.1} parent=1 // pred_check
      _
    $region47: #{tpu_custom_call.1} parent=1 // pred_check_branch
      %44 = sbr.rel (0) target = $region49
    $region48: #{tpu_custom_call.1} parent=1 // pred_region
      _
    $region49: #{tpu_custom_call.1} parent=1 // pred_fallthru
      _
    // Predicated region
    $region50: #{tpu_custom_call.1} parent=1 // pred_check
      _
    $region51: #{tpu_custom_call.1} parent=1 // pred_check_branch
      %46 = sbr.rel (0) target = $region53
    $region52: #{tpu_custom_call.1} parent=1 // pred_region
      _
    $region53: #{tpu_custom_call.1} parent=1 // pred_fallthru
      _
    // Predicated region
    $region54: #{tpu_custom_call.1} parent=1 // pred_check
      _
    $region55: #{tpu_custom_call.1} parent=1 // pred_check_branch
      %48 = sbr.rel (0) target = $region57
    $region56: #{tpu_custom_call.1} parent=1 // pred_region
      _
    $region57: #{tpu_custom_call.1} parent=1 // pred_fallthru
      _
    // Predicated region
    $region58: #{tpu_custom_call.1} parent=1 // pred_check
      _
    $region59: #{tpu_custom_call.1} parent=1 // pred_check_branch
      %50 = sbr.rel (0) target = $region61
    $region60: #{tpu_custom_call.1} parent=1 // pred_region
      _
    $region61: #{tpu_custom_call.1} parent=1 // pred_fallthru
      _
    %v52 = vld [vmem:[%s0] sm:$0xff]
    %v53 = vld [vmem:[%s0 + $0x8] sm:$0xff]
    %v54 = vld [vmem:[%s0 + $0x10] sm:$0xff]
    %v55 = vld [vmem:[%s0 + $0x18] sm:$0xff]
    %v56 = vld [vmem:[%s1] sm:$0xf]
    %v57 = vld [vmem:[%s2] sm:$0xff]
    %59 = vset.pattern.permute.xlu0 0
    %60 = vperm.xlu0 %59, %v57
    %v61 = vpop.permute.xlu0 %60
    %v67 = vunpack.c.l.b16 %v52
    %v68 = vunpack.c.h.b16 %v52
    %v69 = vunpack.c.l.b16 %v53
    %v70 = vunpack.c.h.b16 %v53
    %v71 = vunpack.c.l.b16 %v54
    %v72 = vunpack.c.h.b16 %v54
    %v73 = vunpack.c.l.b16 %v55
    %v74 = vunpack.c.h.b16 %v55
    %v75 = vpack.c.b16 %v71, %v67
    %v76 = vpack.c.b16 %v72, %v68
    %v77 = vpack.c.b16 %v73, %v69
    %v78 = vpack.c.b16 %v74, %v70
    %vm83 = vcmask 130048
    %v85 = vsel %vm83, %v56, 0
    %87 = vmatpush.bf16.msra.mxu0 0
    %88 = vmatpush.bf16.msra.mxu0 0
    %89 = vmatpush.bf16.msra.mxu0 0
    %90 = vmatpush.bf16.msra.mxu0 0
    %91 = vmatpush.bf16.msra.mxu0 0
    %92 = vmatpush.bf16.msra.mxu0 0
    %93 = vmatpush.bf16.msra.mxu0 0
    %94 = vmatpush.bf16.msra.mxu0 %v75
    %95 = vmatmul.bf16.gmra.mxu0 %v85
    %v96 = vpop.f32.mrf.mxu0
    %v97 = vadd.f32 %v61, %v96
    %v98 = vpop.f32.mrf.mxu0
    %99 = vdwg.mxu0
    %100 = vmatpush.bf16.msra.mxu0 0
    %101 = vmatpush.bf16.msra.mxu0 0
    %102 = vmatpush.bf16.msra.mxu0 0
    %103 = vmatpush.bf16.msra.mxu0 0
    %104 = vmatpush.bf16.msra.mxu0 0
    %105 = vmatpush.bf16.msra.mxu0 0
    %106 = vmatpush.bf16.msra.mxu0 0
    %107 = vmatpush.bf16.msra.mxu0 %v76
    %108 = vmatmul.bf16.gmra.mxu0 %v85
    %v109 = vpop.f32.mrf.mxu0
    %v110 = vadd.f32 %v61, %v109
    %v111 = vpop.f32.mrf.mxu0
    %112 = vdwg.mxu0
    %113 = vmatpush.bf16.msra.mxu0 0
    %114 = vmatpush.bf16.msra.mxu0 0
    %115 = vmatpush.bf16.msra.mxu0 0
    %116 = vmatpush.bf16.msra.mxu0 0
    %117 = vmatpush.bf16.msra.mxu0 0
    %118 = vmatpush.bf16.msra.mxu0 0
    %119 = vmatpush.bf16.msra.mxu0 0
    %120 = vmatpush.bf16.msra.mxu0 %v77
    %121 = vmatmul.bf16.gmra.mxu0 %v85
    %v122 = vpop.f32.mrf.mxu0
    %v123 = vadd.f32 %v61, %v122
    %v124 = vpop.f32.mrf.mxu0
    %125 = vdwg.mxu0
    %126 = vmatpush.bf16.msra.mxu0 0
    %127 = vmatpush.bf16.msra.mxu0 0
    %128 = vmatpush.bf16.msra.mxu0 0
    %129 = vmatpush.bf16.msra.mxu0 0
    %130 = vmatpush.bf16.msra.mxu0 0
    %131 = vmatpush.bf16.msra.mxu0 0
    %132 = vmatpush.bf16.msra.mxu0 0
    %133 = vmatpush.bf16.msra.mxu0 %v78
    %134 = vmatmul.bf16.gmra.mxu0 %v85
    %v135 = vpop.f32.mrf.mxu0
    %v136 = vadd.f32 %v61, %v135
    %v137 = vpop.f32.mrf.mxu0
    %138 = vdwg.mxu0
    %v139 = vadd.f32 %v97, 3.0
    %v140 = vadd.f32 %v110, 3.0
    %v141 = vadd.f32 %v123, 3.0
    %v142 = vadd.f32 %v136, 3.0
    %v143 = vmax.f32 %v139, 0.0
    %v144 = vmax.f32 %v140, 0.0
    %v145 = vmax.f32 %v141, 0.0
    %v146 = vmax.f32 %v142, 0.0
    %v147 = vmin.f32 %v143, 6.0
    %v148 = vmin.f32 %v144, 6.0
    %v149 = vmin.f32 %v145, 6.0
    %v150 = vmin.f32 %v146, 6.0
    %v151 = vmul.f32 %v97, %v147
    %v152 = vmul.f32 %v110, %v148
    %v153 = vmul.f32 %v123, %v149
    %v154 = vmul.f32 %v136, %v150
    %v155 = vmul.f32 %v151, 0.16666667
    %v156 = vmul.f32 %v152, 0.16666667
    %v157 = vmul.f32 %v153, 0.16666667
    %v158 = vmul.f32 %v154, 0.16666667
    %v159 = vld [vmem:[%s3] sm:$0xf]
    %v160 = vpack.c.bf16 %v155, %v155
    %v161 = vpack.c.bf16 %v156, %v156
    %v162 = vpack.c.bf16 %v157, %v157
    %v163 = vpack.c.bf16 %v158, %v158
    %v164 = vld [vmem:[%s4] sm:$0xff]
    %166 = vset.pattern.permute.xlu0 0
    %167 = vperm.xlu0 %166, %v164
    %v168 = vpop.permute.xlu0 %167
    %vm170 = vcmask 64512
    %v172 = vsel %vm170, %v159, 0
    %vm174 = vcmask 1043456
    %v176 = vsel %vm174, %v160, 0
    %v179 = vsel %vm174, %v161, 0
    %v182 = vsel %vm174, %v162, 0
    %v185 = vsel %vm174, %v163, 0
    %187 = vmatpush.bf16.msra.mxu0 0
    %188 = vmatpush.bf16.msra.mxu0 0
    %189 = vmatpush.bf16.msra.mxu0 0
    %190 = vmatpush.bf16.msra.mxu0 0
    %191 = vmatpush.bf16.msra.mxu0 0
    %192 = vmatpush.bf16.msra.mxu0 0
    %193 = vmatpush.bf16.msra.mxu0 0
    %194 = vmatpush.bf16.msra.mxu0 %v176
    %195 = vmatmul.bf16.gmra.mxu0 %v172
    %v196 = vpop.f32.mrf.mxu0
    %v197 = vadd.f32 %v168, %v196
    %v198 = vpop.f32.mrf.mxu0
    %199 = vdwg.mxu0
    %200 = vmatpush.bf16.msra.mxu0 0
    %201 = vmatpush.bf16.msra.mxu0 0
    %202 = vmatpush.bf16.msra.mxu0 0
    %203 = vmatpush.bf16.msra.mxu0 0
    %204 = vmatpush.bf16.msra.mxu0 0
    %205 = vmatpush.bf16.msra.mxu0 0
    %206 = vmatpush.bf16.msra.mxu0 0
    %207 = vmatpush.bf16.msra.mxu0 %v179
    %208 = vmatmul.bf16.gmra.mxu0 %v172
    %v209 = vpop.f32.mrf.mxu0
    %v210 = vadd.f32 %v168, %v209
    %v211 = vpop.f32.mrf.mxu0
    %212 = vdwg.mxu0
    %213 = vmatpush.bf16.msra.mxu0 0
    %214 = vmatpush.bf16.msra.mxu0 0
    %215 = vmatpush.bf16.msra.mxu0 0
    %216 = vmatpush.bf16.msra.mxu0 0
    %217 = vmatpush.bf16.msra.mxu0 0
    %218 = vmatpush.bf16.msra.mxu0 0
    %219 = vmatpush.bf16.msra.mxu0 0
    %220 = vmatpush.bf16.msra.mxu0 %v182
    %221 = vmatmul.bf16.gmra.mxu0 %v172
    %v222 = vpop.f32.mrf.mxu0
    %v223 = vadd.f32 %v168, %v222
    %v224 = vpop.f32.mrf.mxu0
    %225 = vdwg.mxu0
    %226 = vmatpush.bf16.msra.mxu0 0
    %227 = vmatpush.bf16.msra.mxu0 0
    %228 = vmatpush.bf16.msra.mxu0 0
    %229 = vmatpush.bf16.msra.mxu0 0
    %230 = vmatpush.bf16.msra.mxu0 0
    %231 = vmatpush.bf16.msra.mxu0 0
    %232 = vmatpush.bf16.msra.mxu0 0
    %233 = vmatpush.bf16.msra.mxu0 %v185
    %234 = vmatmul.bf16.gmra.mxu0 %v172
    %v235 = vpop.f32.mrf.mxu0
    %v236 = vadd.f32 %v168, %v235
    %v237 = vpop.f32.mrf.mxu0
    %238 = vdwg.mxu0
    %v239 = vadd.f32 %v197, 3.0
    %v240 = vadd.f32 %v210, 3.0
    %v241 = vadd.f32 %v223, 3.0
    %v242 = vadd.f32 %v236, 3.0
    %v243 = vmax.f32 %v239, 0.0
    %v244 = vmax.f32 %v240, 0.0
    %v245 = vmax.f32 %v241, 0.0
    %v246 = vmax.f32 %v242, 0.0
    %v247 = vmin.f32 %v243, 6.0
    %v248 = vmin.f32 %v244, 6.0
    %v249 = vmin.f32 %v245, 6.0
    %v250 = vmin.f32 %v246, 6.0
    %v251 = vmul.f32 %v197, %v247
    %v252 = vmul.f32 %v210, %v248
    %v253 = vmul.f32 %v223, %v249
    %v254 = vmul.f32 %v236, %v250
    %v255 = vmul.f32 %v251, 0.16666667
    %v256 = vmul.f32 %v252, 0.16666667
    %v257 = vmul.f32 %v253, 0.16666667
    %v258 = vmul.f32 %v254, 0.16666667
    %259 = vrot.lane.b32.xlu0 %v255, 17
    %v260 = vpop.permute.xlu0 %259
    %261 = vrot.lane.b32.xlu0 %v256, 17
    %v262 = vpop.permute.xlu0 %261
    %263 = vrot.lane.b32.xlu0 %v257, 17
    %v264 = vpop.permute.xlu0 %263
    %265 = vrot.lane.b32.xlu0 %v258, 17
    %v266 = vpop.permute.xlu0 %265
    %v267 = vlaneseq
    %v268 = vand.u32 %v267, 127
    %vm269 = vcmp.lt.s32.totalorder %v268, 17
    %v270 = vsel %vm269, %v264, %v266
    %v271 = vsel %vm269, %v262, %v264
    %v272 = vsel %vm269, %v260, %v262
    %v273 = vsel %vm269, %v266, %v260
    %v274 = vld [vmem:[%s14] ss:$8 sm:$0xf]
    %v276 = vperm.slane %v274, 0
    %v277 = vperm.slane %v274, 1
    %v278 = vperm.slane %v274, 2
    %v279 = vperm.slane %v274, 3
    %v284 = vmul.f32 %v273, %v276
    %v285 = vmul.f32 %v272, %v277
    %v286 = vmul.f32 %v271, %v278
    %v287 = vmul.f32 %v270, %v279
    %v288 = vld [vmem:[%s5] sm:$0xf]
    %v289 = vpack.c.bf16 %v284, %v284
    %v290 = vpack.c.bf16 %v285, %v285
    %v291 = vpack.c.bf16 %v286, %v286
    %v292 = vpack.c.bf16 %v287, %v287
    %293 = vrot.lane.b32.xlu0 %v255, 16
    %v294 = vpop.permute.xlu0 %293
    %295 = vrot.lane.b32.xlu0 %v256, 16
    %v296 = vpop.permute.xlu0 %295
    %297 = vrot.lane.b32.xlu0 %v257, 16
    %v298 = vpop.permute.xlu0 %297
    %299 = vrot.lane.b32.xlu0 %v258, 16
    %v300 = vpop.permute.xlu0 %299
    %vm301 = vcmp.lt.s32.totalorder %v268, 16
    %v302 = vsel %vm301, %v298, %v300
    %v303 = vsel %vm301, %v296, %v298
    %v304 = vsel %vm301, %v294, %v296
    %v305 = vsel %vm301, %v300, %v294
    %s306 = scalar_lea.vmem %s14, 1
    %v307 = vld [vmem:[%s306] ss:$8 sm:$0xf]
    %v309 = vperm.slane %v307, 0
    %v310 = vperm.slane %v307, 1
    %v311 = vperm.slane %v307, 2
    %v312 = vperm.slane %v307, 3
    %v317 = vmul.f32 %v305, %v309
    %v318 = vmul.f32 %v304, %v310
    %v319 = vmul.f32 %v303, %v311
    %v320 = vmul.f32 %v302, %v312
    %s321 = scalar_lea.vmem %s5, 4
    %v322 = vld [vmem:[%s321] sm:$0xf]
    %v323 = vpack.c.bf16 %v317, %v317
    %v324 = vpack.c.bf16 %v318, %v318
    %v325 = vpack.c.bf16 %v319, %v319
    %v326 = vpack.c.bf16 %v320, %v320
    %v328 = vsel %vm170, %v322, 0
    %v331 = vsel %vm174, %v323, 0
    %v334 = vsel %vm174, %v324, 0
    %v337 = vsel %vm174, %v325, 0
    %v340 = vsel %vm174, %v326, 0
    %342 = vmatpush.bf16.msra.mxu0 0
    %343 = vmatpush.bf16.msra.mxu0 0
    %344 = vmatpush.bf16.msra.mxu0 0
    %345 = vmatpush.bf16.msra.mxu0 0
    %346 = vmatpush.bf16.msra.mxu0 0
    %347 = vmatpush.bf16.msra.mxu0 0
    %348 = vmatpush.bf16.msra.mxu0 0
    %349 = vmatpush.bf16.msra.mxu0 %v331
    %350 = vmatmul.bf16.gmra.mxu0 %v328
    %v351 = vpop.f32.mrf.mxu0
    %v352 = vadd.f32 0.0, %v351
    %v353 = vpop.f32.mrf.mxu0
    %354 = vdwg.mxu0
    %355 = vmatpush.bf16.msra.mxu0 0
    %356 = vmatpush.bf16.msra.mxu0 0
    %357 = vmatpush.bf16.msra.mxu0 0
    %358 = vmatpush.bf16.msra.mxu0 0
    %359 = vmatpush.bf16.msra.mxu0 0
    %360 = vmatpush.bf16.msra.mxu0 0
    %361 = vmatpush.bf16.msra.mxu0 0
    %362 = vmatpush.bf16.msra.mxu0 %v334
    %363 = vmatmul.bf16.gmra.mxu0 %v328
    %v364 = vpop.f32.mrf.mxu0
    %v365 = vadd.f32 0.0, %v364
    %v366 = vpop.f32.mrf.mxu0
    %367 = vdwg.mxu0
    %368 = vmatpush.bf16.msra.mxu0 0
    %369 = vmatpush.bf16.msra.mxu0 0
    %370 = vmatpush.bf16.msra.mxu0 0
    %371 = vmatpush.bf16.msra.mxu0 0
    %372 = vmatpush.bf16.msra.mxu0 0
    %373 = vmatpush.bf16.msra.mxu0 0
    %374 = vmatpush.bf16.msra.mxu0 0
    %375 = vmatpush.bf16.msra.mxu0 %v337
    %376 = vmatmul.bf16.gmra.mxu0 %v328
    %v377 = vpop.f32.mrf.mxu0
    %v378 = vadd.f32 0.0, %v377
    %v379 = vpop.f32.mrf.mxu0
    %380 = vdwg.mxu0
    %381 = vmatpush.bf16.msra.mxu0 0
    %382 = vmatpush.bf16.msra.mxu0 0
    %383 = vmatpush.bf16.msra.mxu0 0
    %384 = vmatpush.bf16.msra.mxu0 0
    %385 = vmatpush.bf16.msra.mxu0 0
    %386 = vmatpush.bf16.msra.mxu0 0
    %387 = vmatpush.bf16.msra.mxu0 0
    %388 = vmatpush.bf16.msra.mxu0 %v340
    %389 = vmatmul.bf16.gmra.mxu0 %v328
    %v390 = vpop.f32.mrf.mxu0
    %v391 = vadd.f32 0.0, %v390
    %v392 = vpop.f32.mrf.mxu0
    %393 = vdwg.mxu0
    %v395 = vsel %vm170, %v288, 0
    %v398 = vsel %vm174, %v289, 0
    %v401 = vsel %vm174, %v290, 0
    %v404 = vsel %vm174, %v291, 0
    %v407 = vsel %vm174, %v292, 0
    %409 = vmatpush.bf16.msra.mxu0 0
    %410 = vmatpush.bf16.msra.mxu0 0
    %411 = vmatpush.bf16.msra.mxu0 0
    %412 = vmatpush.bf16.msra.mxu0 0
    %413 = vmatpush.bf16.msra.mxu0 0
    %414 = vmatpush.bf16.msra.mxu0 0
    %415 = vmatpush.bf16.msra.mxu0 0
    %416 = vmatpush.bf16.msra.mxu0 %v398
    %417 = vmatmul.bf16.gmra.mxu0 %v395
    %v418 = vpop.f32.mrf.mxu0
    %v419 = vadd.f32 %v352, %v418
    %v420 = vpop.f32.mrf.mxu0
    %421 = vdwg.mxu0
    %422 = vmatpush.bf16.msra.mxu0 0
    %423 = vmatpush.bf16.msra.mxu0 0
    %424 = vmatpush.bf16.msra.mxu0 0
    %425 = vmatpush.bf16.msra.mxu0 0
    %426 = vmatpush.bf16.msra.mxu0 0
    %427 = vmatpush.bf16.msra.mxu0 0
    %428 = vmatpush.bf16.msra.mxu0 0
    %429 = vmatpush.bf16.msra.mxu0 %v401
    %430 = vmatmul.bf16.gmra.mxu0 %v395
    %v431 = vpop.f32.mrf.mxu0
    %v432 = vadd.f32 %v365, %v431
    %v433 = vpop.f32.mrf.mxu0
    %434 = vdwg.mxu0
    %435 = vmatpush.bf16.msra.mxu0 0
    %436 = vmatpush.bf16.msra.mxu0 0
    %437 = vmatpush.bf16.msra.mxu0 0
    %438 = vmatpush.bf16.msra.mxu0 0
    %439 = vmatpush.bf16.msra.mxu0 0
    %440 = vmatpush.bf16.msra.mxu0 0
    %441 = vmatpush.bf16.msra.mxu0 0
    %442 = vmatpush.bf16.msra.mxu0 %v404
    %443 = vmatmul.bf16.gmra.mxu0 %v395
    %v444 = vpop.f32.mrf.mxu0
    %v445 = vadd.f32 %v378, %v444
    %v446 = vpop.f32.mrf.mxu0
    %447 = vdwg.mxu0
    %448 = vmatpush.bf16.msra.mxu0 0
    %449 = vmatpush.bf16.msra.mxu0 0
    %450 = vmatpush.bf16.msra.mxu0 0
    %451 = vmatpush.bf16.msra.mxu0 0
    %452 = vmatpush.bf16.msra.mxu0 0
    %453 = vmatpush.bf16.msra.mxu0 0
    %454 = vmatpush.bf16.msra.mxu0 0
    %455 = vmatpush.bf16.msra.mxu0 %v407
    %456 = vmatmul.bf16.gmra.mxu0 %v395
    %v457 = vpop.f32.mrf.mxu0
    %v458 = vadd.f32 %v391, %v457
    %v459 = vpop.f32.mrf.mxu0
    %460 = vdwg.mxu0
    %461 = vrot.lane.b32.xlu0 %v255, 15
    %v462 = vpop.permute.xlu0 %461
    %463 = vrot.lane.b32.xlu0 %v256, 15
    %v464 = vpop.permute.xlu0 %463
    %465 = vrot.lane.b32.xlu0 %v257, 15
    %v466 = vpop.permute.xlu0 %465
    %467 = vrot.lane.b32.xlu0 %v258, 15
    %v468 = vpop.permute.xlu0 %467
    %vm469 = vcmp.lt.s32.totalorder %v268, 15
    %v470 = vsel %vm469, %v466, %v468
    %v471 = vsel %vm469, %v464, %v466
    %v472 = vsel %vm469, %v462, %v464
    %v473 = vsel %vm469, %v468, %v462
    %s474 = scalar_lea.vmem %s14, 2
    %v475 = vld [vmem:[%s474] ss:$8 sm:$0xf]
    %v477 = vperm.slane %v475, 0
    %v478 = vperm.slane %v475, 1
    %v479 = vperm.slane %v475, 2
    %v480 = vperm.slane %v475, 3
    %v485 = vmul.f32 %v473, %v477
    %v486 = vmul.f32 %v472, %v478
    %v487 = vmul.f32 %v471, %v479
    %v488 = vmul.f32 %v470, %v480
    %s489 = scalar_lea.vmem %s5, 8
    %v490 = vld [vmem:[%s489] sm:$0xf]
    %v491 = vpack.c.bf16 %v485, %v485
    %v492 = vpack.c.bf16 %v486, %v486
    %v493 = vpack.c.bf16 %v487, %v487
    %v494 = vpack.c.bf16 %v488, %v488
    %v496 = vsel %vm170, %v490, 0
    %v499 = vsel %vm174, %v491, 0
    %v502 = vsel %vm174, %v492, 0
    %v505 = vsel %vm174, %v493, 0
    %v508 = vsel %vm174, %v494, 0
    %510 = vmatpush.bf16.msra.mxu0 0
    %511 = vmatpush.bf16.msra.mxu0 0
    %512 = vmatpush.bf16.msra.mxu0 0
    %513 = vmatpush.bf16.msra.mxu0 0
    %514 = vmatpush.bf16.msra.mxu0 0
    %515 = vmatpush.bf16.msra.mxu0 0
    %516 = vmatpush.bf16.msra.mxu0 0
    %517 = vmatpush.bf16.msra.mxu0 %v499
    %518 = vmatmul.bf16.gmra.mxu0 %v496
    %v519 = vpop.f32.mrf.mxu0
    %v520 = vadd.f32 0.0, %v519
    %v521 = vpop.f32.mrf.mxu0
    %522 = vdwg.mxu0
    %523 = vmatpush.bf16.msra.mxu0 0
    %524 = vmatpush.bf16.msra.mxu0 0
    %525 = vmatpush.bf16.msra.mxu0 0
    %526 = vmatpush.bf16.msra.mxu0 0
    %527 = vmatpush.bf16.msra.mxu0 0
    %528 = vmatpush.bf16.msra.mxu0 0
    %529 = vmatpush.bf16.msra.mxu0 0
    %530 = vmatpush.bf16.msra.mxu0 %v502
    %531 = vmatmul.bf16.gmra.mxu0 %v496
    %v532 = vpop.f32.mrf.mxu0
    %v533 = vadd.f32 0.0, %v532
    %v534 = vpop.f32.mrf.mxu0
    %535 = vdwg.mxu0
    %536 = vmatpush.bf16.msra.mxu0 0
    %537 = vmatpush.bf16.msra.mxu0 0
    %538 = vmatpush.bf16.msra.mxu0 0
    %539 = vmatpush.bf16.msra.mxu0 0
    %540 = vmatpush.bf16.msra.mxu0 0
    %541 = vmatpush.bf16.msra.mxu0 0
    %542 = vmatpush.bf16.msra.mxu0 0
    %543 = vmatpush.bf16.msra.mxu0 %v505
    %544 = vmatmul.bf16.gmra.mxu0 %v496
    %v545 = vpop.f32.mrf.mxu0
    %v546 = vadd.f32 0.0, %v545
    %v547 = vpop.f32.mrf.mxu0
    %548 = vdwg.mxu0
    %549 = vmatpush.bf16.msra.mxu0 0
    %550 = vmatpush.bf16.msra.mxu0 0
    %551 = vmatpush.bf16.msra.mxu0 0
    %552 = vmatpush.bf16.msra.mxu0 0
    %553 = vmatpush.bf16.msra.mxu0 0
    %554 = vmatpush.bf16.msra.mxu0 0
    %555 = vmatpush.bf16.msra.mxu0 0
    %556 = vmatpush.bf16.msra.mxu0 %v508
    %557 = vmatmul.bf16.gmra.mxu0 %v496
    %v558 = vpop.f32.mrf.mxu0
    %v559 = vadd.f32 0.0, %v558
    %v560 = vpop.f32.mrf.mxu0
    %561 = vdwg.mxu0
    %v562 = vadd.f32 %v419, %v520
    %v563 = vadd.f32 %v432, %v533
    %v564 = vadd.f32 %v445, %v546
    %v565 = vadd.f32 %v458, %v559
    %566 = vrot.lane.b32.xlu0 %v255, 1
    %v567 = vpop.permute.xlu0 %566
    %568 = vrot.lane.b32.xlu0 %v256, 1
    %v569 = vpop.permute.xlu0 %568
    %570 = vrot.lane.b32.xlu0 %v257, 1
    %v571 = vpop.permute.xlu0 %570
    %572 = vrot.lane.b32.xlu0 %v258, 1
    %v573 = vpop.permute.xlu0 %572
    %vm574 = vcmp.lt.s32.totalorder %v268, 1
    %v575 = vsel %vm574, %v571, %v573
    %v576 = vsel %vm574, %v569, %v571
    %v577 = vsel %vm574, %v567, %v569
    %v578 = vsel %vm574, %v573, %v567
    %s579 = scalar_lea.vmem %s14, 3
    %v580 = vld [vmem:[%s579] ss:$8 sm:$0xf]
    %v582 = vperm.slane %v580, 0
    %v583 = vperm.slane %v580, 1
    %v584 = vperm.slane %v580, 2
    %v585 = vperm.slane %v580, 3
    %v590 = vmul.f32 %v578, %v582
    %v591 = vmul.f32 %v577, %v583
    %v592 = vmul.f32 %v576, %v584
    %v593 = vmul.f32 %v575, %v585
    %s594 = scalar_lea.vmem %s5, 12
    %v595 = vld [vmem:[%s594] sm:$0xf]
    %v596 = vpack.c.bf16 %v590, %v590
    %v597 = vpack.c.bf16 %v591, %v591
    %v598 = vpack.c.bf16 %v592, %v592
    %v599 = vpack.c.bf16 %v593, %v593
    %v601 = vsel %vm170, %v595, 0
    %v604 = vsel %vm174, %v596, 0
    %v607 = vsel %vm174, %v597, 0
    %v610 = vsel %vm174, %v598, 0
    %v613 = vsel %vm174, %v599, 0
    %615 = vmatpush.bf16.msra.mxu0 0
    %616 = vmatpush.bf16.msra.mxu0 0
    %617 = vmatpush.bf16.msra.mxu0 0
    %618 = vmatpush.bf16.msra.mxu0 0
    %619 = vmatpush.bf16.msra.mxu0 0
    %620 = vmatpush.bf16.msra.mxu0 0
    %621 = vmatpush.bf16.msra.mxu0 0
    %622 = vmatpush.bf16.msra.mxu0 %v604
    %623 = vmatmul.bf16.gmra.mxu0 %v601
    %v624 = vpop.f32.mrf.mxu0
    %v625 = vadd.f32 0.0, %v624
    %v626 = vpop.f32.mrf.mxu0
    %627 = vdwg.mxu0
    %628 = vmatpush.bf16.msra.mxu0 0
    %629 = vmatpush.bf16.msra.mxu0 0
    %630 = vmatpush.bf16.msra.mxu0 0
    %631 = vmatpush.bf16.msra.mxu0 0
    %632 = vmatpush.bf16.msra.mxu0 0
    %633 = vmatpush.bf16.msra.mxu0 0
    %634 = vmatpush.bf16.msra.mxu0 0
    %635 = vmatpush.bf16.msra.mxu0 %v607
    %636 = vmatmul.bf16.gmra.mxu0 %v601
    %v637 = vpop.f32.mrf.mxu0
    %v638 = vadd.f32 0.0, %v637
    %v639 = vpop.f32.mrf.mxu0
    %640 = vdwg.mxu0
    %641 = vmatpush.bf16.msra.mxu0 0
    %642 = vmatpush.bf16.msra.mxu0 0
    %643 = vmatpush.bf16.msra.mxu0 0
    %644 = vmatpush.bf16.msra.mxu0 0
    %645 = vmatpush.bf16.msra.mxu0 0
    %646 = vmatpush.bf16.msra.mxu0 0
    %647 = vmatpush.bf16.msra.mxu0 0
    %648 = vmatpush.bf16.msra.mxu0 %v610
    %649 = vmatmul.bf16.gmra.mxu0 %v601
    %v650 = vpop.f32.mrf.mxu0
    %v651 = vadd.f32 0.0, %v650
    %v652 = vpop.f32.mrf.mxu0
    %653 = vdwg.mxu0
    %654 = vmatpush.bf16.msra.mxu0 0
    %655 = vmatpush.bf16.msra.mxu0 0
    %656 = vmatpush.bf16.msra.mxu0 0
    %657 = vmatpush.bf16.msra.mxu0 0
    %658 = vmatpush.bf16.msra.mxu0 0
    %659 = vmatpush.bf16.msra.mxu0 0
    %660 = vmatpush.bf16.msra.mxu0 0
    %661 = vmatpush.bf16.msra.mxu0 %v613
    %662 = vmatmul.bf16.gmra.mxu0 %v601
    %v663 = vpop.f32.mrf.mxu0
    %v664 = vadd.f32 0.0, %v663
    %v665 = vpop.f32.mrf.mxu0
    %666 = vdwg.mxu0
    %v667 = vadd.f32 %v562, %v625
    %v668 = vadd.f32 %v563, %v638
    %v669 = vadd.f32 %v564, %v651
    %v670 = vadd.f32 %v565, %v664
    %s671 = scalar_lea.vmem %s5, 16
    %v672 = vld [vmem:[%s671] sm:$0xf]
    %v673 = vpack.c.bf16 %v255, %v255
    %v674 = vpack.c.bf16 %v256, %v256
    %v675 = vpack.c.bf16 %v257, %v257
    %v676 = vpack.c.bf16 %v258, %v258
    %v678 = vsel %vm170, %v672, 0
    %v681 = vsel %vm174, %v673, 0
    %v684 = vsel %vm174, %v674, 0
    %v687 = vsel %vm174, %v675, 0
    %v690 = vsel %vm174, %v676, 0
    %692 = vmatpush.bf16.msra.mxu0 0
    %693 = vmatpush.bf16.msra.mxu0 0
    %694 = vmatpush.bf16.msra.mxu0 0
    %695 = vmatpush.bf16.msra.mxu0 0
    %696 = vmatpush.bf16.msra.mxu0 0
    %697 = vmatpush.bf16.msra.mxu0 0
    %698 = vmatpush.bf16.msra.mxu0 0
    %699 = vmatpush.bf16.msra.mxu0 %v681
    %700 = vmatmul.bf16.gmra.mxu0 %v678
    %v701 = vpop.f32.mrf.mxu0
    %v702 = vadd.f32 0.0, %v701
    %v703 = vpop.f32.mrf.mxu0
    %704 = vdwg.mxu0
    %705 = vmatpush.bf16.msra.mxu0 0
    %706 = vmatpush.bf16.msra.mxu0 0
    %707 = vmatpush.bf16.msra.mxu0 0
    %708 = vmatpush.bf16.msra.mxu0 0
    %709 = vmatpush.bf16.msra.mxu0 0
    %710 = vmatpush.bf16.msra.mxu0 0
    %711 = vmatpush.bf16.msra.mxu0 0
    %712 = vmatpush.bf16.msra.mxu0 %v684
    %713 = vmatmul.bf16.gmra.mxu0 %v678
    %v714 = vpop.f32.mrf.mxu0
    %v715 = vadd.f32 0.0, %v714
    %v716 = vpop.f32.mrf.mxu0
    %717 = vdwg.mxu0
    %718 = vmatpush.bf16.msra.mxu0 0
    %719 = vmatpush.bf16.msra.mxu0 0
    %720 = vmatpush.bf16.msra.mxu0 0
    %721 = vmatpush.bf16.msra.mxu0 0
    %722 = vmatpush.bf16.msra.mxu0 0
    %723 = vmatpush.bf16.msra.mxu0 0
    %724 = vmatpush.bf16.msra.mxu0 0
    %725 = vmatpush.bf16.msra.mxu0 %v687
    %726 = vmatmul.bf16.gmra.mxu0 %v678
    %v727 = vpop.f32.mrf.mxu0
    %v728 = vadd.f32 0.0, %v727
    %v729 = vpop.f32.mrf.mxu0
    %730 = vdwg.mxu0
    %731 = vmatpush.bf16.msra.mxu0 0
    %732 = vmatpush.bf16.msra.mxu0 0
    %733 = vmatpush.bf16.msra.mxu0 0
    %734 = vmatpush.bf16.msra.mxu0 0
    %735 = vmatpush.bf16.msra.mxu0 0
    %736 = vmatpush.bf16.msra.mxu0 0
    %737 = vmatpush.bf16.msra.mxu0 0
    %738 = vmatpush.bf16.msra.mxu0 %v690
    %739 = vmatmul.bf16.gmra.mxu0 %v678
    %v740 = vpop.f32.mrf.mxu0
    %v741 = vadd.f32 0.0, %v740
    %v742 = vpop.f32.mrf.mxu0
    %743 = vdwg.mxu0
    %v744 = vadd.f32 %v667, %v702
    %v745 = vadd.f32 %v668, %v715
    %v746 = vadd.f32 %v669, %v728
    %v747 = vadd.f32 %v670, %v741
    %748 = vrot.lane.b32.xlu0 %v255, 127
    %v749 = vpop.permute.xlu0 %748
    %750 = vrot.lane.b32.xlu0 %v256, 127
    %v751 = vpop.permute.xlu0 %750
    %752 = vrot.lane.b32.xlu0 %v257, 127
    %v753 = vpop.permute.xlu0 %752
    %754 = vrot.lane.b32.xlu0 %v258, 127
    %v755 = vpop.permute.xlu0 %754
    %vm756 = vcmp.lt.s32.totalorder %v268, 127
    %v757 = vsel %vm756, %v753, %v755
    %v758 = vsel %vm756, %v751, %v753
    %v759 = vsel %vm756, %v749, %v751
    %v760 = vsel %vm756, %v755, %v749
    %s761 = scalar_lea.vmem %s14, 5
    %v762 = vld [vmem:[%s761] ss:$8 sm:$0xf]
    %v764 = vperm.slane %v762, 0
    %v765 = vperm.slane %v762, 1
    %v766 = vperm.slane %v762, 2
    %v767 = vperm.slane %v762, 3
    %v772 = vmul.f32 %v759, %v764
    %v773 = vmul.f32 %v758, %v765
    %v774 = vmul.f32 %v757, %v766
    %v775 = vmul.f32 %v760, %v767
    %s776 = scalar_lea.vmem %s5, 20
    %v777 = vld [vmem:[%s776] sm:$0xf]
    %v778 = vpack.c.bf16 %v772, %v772
    %v779 = vpack.c.bf16 %v773, %v773
    %v780 = vpack.c.bf16 %v774, %v774
    %v781 = vpack.c.bf16 %v775, %v775
    %v783 = vsel %vm170, %v777, 0
    %v786 = vsel %vm174, %v778, 0
    %v789 = vsel %vm174, %v779, 0
    %v792 = vsel %vm174, %v780, 0
    %v795 = vsel %vm174, %v781, 0
    %797 = vmatpush.bf16.msra.mxu0 0
    %798 = vmatpush.bf16.msra.mxu0 0
    %799 = vmatpush.bf16.msra.mxu0 0
    %800 = vmatpush.bf16.msra.mxu0 0
    %801 = vmatpush.bf16.msra.mxu0 0
    %802 = vmatpush.bf16.msra.mxu0 0
    %803 = vmatpush.bf16.msra.mxu0 0
    %804 = vmatpush.bf16.msra.mxu0 %v786
    %805 = vmatmul.bf16.gmra.mxu0 %v783
    %v806 = vpop.f32.mrf.mxu0
    %v807 = vadd.f32 0.0, %v806
    %v808 = vpop.f32.mrf.mxu0
    %809 = vdwg.mxu0
    %810 = vmatpush.bf16.msra.mxu0 0
    %811 = vmatpush.bf16.msra.mxu0 0
    %812 = vmatpush.bf16.msra.mxu0 0
    %813 = vmatpush.bf16.msra.mxu0 0
    %814 = vmatpush.bf16.msra.mxu0 0
    %815 = vmatpush.bf16.msra.mxu0 0
    %816 = vmatpush.bf16.msra.mxu0 0
    %817 = vmatpush.bf16.msra.mxu0 %v789
    %818 = vmatmul.bf16.gmra.mxu0 %v783
    %v819 = vpop.f32.mrf.mxu0
    %v820 = vadd.f32 0.0, %v819
    %v821 = vpop.f32.mrf.mxu0
    %822 = vdwg.mxu0
    %823 = vmatpush.bf16.msra.mxu0 0
    %824 = vmatpush.bf16.msra.mxu0 0
    %825 = vmatpush.bf16.msra.mxu0 0
    %826 = vmatpush.bf16.msra.mxu0 0
    %827 = vmatpush.bf16.msra.mxu0 0
    %828 = vmatpush.bf16.msra.mxu0 0
    %829 = vmatpush.bf16.msra.mxu0 0
    %830 = vmatpush.bf16.msra.mxu0 %v792
    %831 = vmatmul.bf16.gmra.mxu0 %v783
    %v832 = vpop.f32.mrf.mxu0
    %v833 = vadd.f32 0.0, %v832
    %v834 = vpop.f32.mrf.mxu0
    %835 = vdwg.mxu0
    %836 = vmatpush.bf16.msra.mxu0 0
    %837 = vmatpush.bf16.msra.mxu0 0
    %838 = vmatpush.bf16.msra.mxu0 0
    %839 = vmatpush.bf16.msra.mxu0 0
    %840 = vmatpush.bf16.msra.mxu0 0
    %841 = vmatpush.bf16.msra.mxu0 0
    %842 = vmatpush.bf16.msra.mxu0 0
    %843 = vmatpush.bf16.msra.mxu0 %v795
    %844 = vmatmul.bf16.gmra.mxu0 %v783
    %v845 = vpop.f32.mrf.mxu0
    %v846 = vadd.f32 0.0, %v845
    %v847 = vpop.f32.mrf.mxu0
    %848 = vdwg.mxu0
    %v849 = vadd.f32 %v744, %v807
    %v850 = vadd.f32 %v745, %v820
    %v851 = vadd.f32 %v746, %v833
    %v852 = vadd.f32 %v747, %v846
    %853 = vrot.lane.b32.xlu0 %v255, 113
    %v854 = vpop.permute.xlu0 %853
    %855 = vrot.lane.b32.xlu0 %v256, 113
    %v856 = vpop.permute.xlu0 %855
    %857 = vrot.lane.b32.xlu0 %v257, 113
    %v858 = vpop.permute.xlu0 %857
    %859 = vrot.lane.b32.xlu0 %v258, 113
    %v860 = vpop.permute.xlu0 %859
    %vm861 = vcmp.lt.s32.totalorder %v268, 113
    %v862 = vsel %vm861, %v858, %v860
    %v863 = vsel %vm861, %v856, %v858
    %v864 = vsel %vm861, %v854, %v856
    %v865 = vsel %vm861, %v860, %v854
    %s866 = scalar_lea.vmem %s14, 6
    %v867 = vld [vmem:[%s866] ss:$8 sm:$0xf]
    %v869 = vperm.slane %v867, 0
    %v870 = vperm.slane %v867, 1
    %v871 = vperm.slane %v867, 2
    %v872 = vperm.slane %v867, 3
    %v877 = vmul.f32 %v864, %v869
    %v878 = vmul.f32 %v863, %v870
    %v879 = vmul.f32 %v862, %v871
    %v880 = vmul.f32 %v865, %v872
    %s881 = scalar_lea.vmem %s5, 24
    %v882 = vld [vmem:[%s881] sm:$0xf]
    %v883 = vpack.c.bf16 %v877, %v877
    %v884 = vpack.c.bf16 %v878, %v878
    %v885 = vpack.c.bf16 %v879, %v879
    %v886 = vpack.c.bf16 %v880, %v880
    %v888 = vsel %vm170, %v882, 0
    %v891 = vsel %vm174, %v883, 0
    %v894 = vsel %vm174, %v884, 0
    %v897 = vsel %vm174, %v885, 0
    %v900 = vsel %vm174, %v886, 0
    %902 = vmatpush.bf16.msra.mxu0 0
    %903 = vmatpush.bf16.msra.mxu0 0
    %904 = vmatpush.bf16.msra.mxu0 0
    %905 = vmatpush.bf16.msra.mxu0 0
    %906 = vmatpush.bf16.msra.mxu0 0
    %907 = vmatpush.bf16.msra.mxu0 0
    %908 = vmatpush.bf16.msra.mxu0 0
    %909 = vmatpush.bf16.msra.mxu0 %v891
    %910 = vmatmul.bf16.gmra.mxu0 %v888
    %v911 = vpop.f32.mrf.mxu0
    %v912 = vadd.f32 0.0, %v911
    %v913 = vpop.f32.mrf.mxu0
    %914 = vdwg.mxu0
    %915 = vmatpush.bf16.msra.mxu0 0
    %916 = vmatpush.bf16.msra.mxu0 0
    %917 = vmatpush.bf16.msra.mxu0 0
    %918 = vmatpush.bf16.msra.mxu0 0
    %919 = vmatpush.bf16.msra.mxu0 0
    %920 = vmatpush.bf16.msra.mxu0 0
    %921 = vmatpush.bf16.msra.mxu0 0
    %922 = vmatpush.bf16.msra.mxu0 %v894
    %923 = vmatmul.bf16.gmra.mxu0 %v888
    %v924 = vpop.f32.mrf.mxu0
    %v925 = vadd.f32 0.0, %v924
    %v926 = vpop.f32.mrf.mxu0
    %927 = vdwg.mxu0
    %928 = vmatpush.bf16.msra.mxu0 0
    %929 = vmatpush.bf16.msra.mxu0 0
    %930 = vmatpush.bf16.msra.mxu0 0
    %931 = vmatpush.bf16.msra.mxu0 0
    %932 = vmatpush.bf16.msra.mxu0 0
    %933 = vmatpush.bf16.msra.mxu0 0
    %934 = vmatpush.bf16.msra.mxu0 0
    %935 = vmatpush.bf16.msra.mxu0 %v897
    %936 = vmatmul.bf16.gmra.mxu0 %v888
    %v937 = vpop.f32.mrf.mxu0
    %v938 = vadd.f32 0.0, %v937
    %v939 = vpop.f32.mrf.mxu0
    %940 = vdwg.mxu0
    %941 = vmatpush.bf16.msra.mxu0 0
    %942 = vmatpush.bf16.msra.mxu0 0
    %943 = vmatpush.bf16.msra.mxu0 0
    %944 = vmatpush.bf16.msra.mxu0 0
    %945 = vmatpush.bf16.msra.mxu0 0
    %946 = vmatpush.bf16.msra.mxu0 0
    %947 = vmatpush.bf16.msra.mxu0 0
    %948 = vmatpush.bf16.msra.mxu0 %v900
    %949 = vmatmul.bf16.gmra.mxu0 %v888
    %v950 = vpop.f32.mrf.mxu0
    %v951 = vadd.f32 0.0, %v950
    %v952 = vpop.f32.mrf.mxu0
    %953 = vdwg.mxu0
    %v954 = vadd.f32 %v849, %v912
    %v955 = vadd.f32 %v850, %v925
    %v956 = vadd.f32 %v851, %v938
    %v957 = vadd.f32 %v852, %v951
    %958 = vrot.lane.b32.xlu0 %v255, 112
    %v959 = vpop.permute.xlu0 %958
    %960 = vrot.lane.b32.xlu0 %v256, 112
    %v961 = vpop.permute.xlu0 %960
    %962 = vrot.lane.b32.xlu0 %v257, 112
    %v963 = vpop.permute.xlu0 %962
    %964 = vrot.lane.b32.xlu0 %v258, 112
    %v965 = vpop.permute.xlu0 %964
    %vm966 = vcmp.lt.s32.totalorder %v268, 112
    %v967 = vsel %vm966, %v963, %v965
    %v968 = vsel %vm966, %v961, %v963
    %v969 = vsel %vm966, %v959, %v961
    %v970 = vsel %vm966, %v965, %v959
    %s971 = scalar_lea.vmem %s14, 7
    %v972 = vld [vmem:[%s971] ss:$8 sm:$0xf]
    %v974 = vperm.slane %v972, 0
    %v975 = vperm.slane %v972, 1
    %v976 = vperm.slane %v972, 2
    %v977 = vperm.slane %v972, 3
    %v982 = vmul.f32 %v969, %v974
    %v983 = vmul.f32 %v968, %v975
    %v984 = vmul.f32 %v967, %v976
    %v985 = vmul.f32 %v970, %v977
    %s986 = scalar_lea.vmem %s5, 28
    %v987 = vld [vmem:[%s986] sm:$0xf]
    %v988 = vpack.c.bf16 %v982, %v982
    %v989 = vpack.c.bf16 %v983, %v983
    %v990 = vpack.c.bf16 %v984, %v984
    %v991 = vpack.c.bf16 %v985, %v985
    %v993 = vsel %vm170, %v987, 0
    %v996 = vsel %vm174, %v988, 0
    %v999 = vsel %vm174, %v989, 0
    %v1002 = vsel %vm174, %v990, 0
    %v1005 = vsel %vm174, %v991, 0
    %1007 = vmatpush.bf16.msra.mxu0 0
    %1008 = vmatpush.bf16.msra.mxu0 0
    %1009 = vmatpush.bf16.msra.mxu0 0
    %1010 = vmatpush.bf16.msra.mxu0 0
    %1011 = vmatpush.bf16.msra.mxu0 0
    %1012 = vmatpush.bf16.msra.mxu0 0
    %1013 = vmatpush.bf16.msra.mxu0 0
    %1014 = vmatpush.bf16.msra.mxu0 %v996
    %1015 = vmatmul.bf16.gmra.mxu0 %v993
    %v1016 = vpop.f32.mrf.mxu0
    %v1017 = vadd.f32 0.0, %v1016
    %v1018 = vpop.f32.mrf.mxu0
    %1019 = vdwg.mxu0
    %1020 = vmatpush.bf16.msra.mxu0 0
    %1021 = vmatpush.bf16.msra.mxu0 0
    %1022 = vmatpush.bf16.msra.mxu0 0
    %1023 = vmatpush.bf16.msra.mxu0 0
    %1024 = vmatpush.bf16.msra.mxu0 0
    %1025 = vmatpush.bf16.msra.mxu0 0
    %1026 = vmatpush.bf16.msra.mxu0 0
    %1027 = vmatpush.bf16.msra.mxu0 %v999
    %1028 = vmatmul.bf16.gmra.mxu0 %v993
    %v1029 = vpop.f32.mrf.mxu0
    %v1030 = vadd.f32 0.0, %v1029
    %v1031 = vpop.f32.mrf.mxu0
    %1032 = vdwg.mxu0
    %1033 = vmatpush.bf16.msra.mxu0 0
    %1034 = vmatpush.bf16.msra.mxu0 0
    %1035 = vmatpush.bf16.msra.mxu0 0
    %1036 = vmatpush.bf16.msra.mxu0 0
    %1037 = vmatpush.bf16.msra.mxu0 0
    %1038 = vmatpush.bf16.msra.mxu0 0
    %1039 = vmatpush.bf16.msra.mxu0 0
    %1040 = vmatpush.bf16.msra.mxu0 %v1002
    %1041 = vmatmul.bf16.gmra.mxu0 %v993
    %v1042 = vpop.f32.mrf.mxu0
    %v1043 = vadd.f32 0.0, %v1042
    %v1044 = vpop.f32.mrf.mxu0
    %1045 = vdwg.mxu0
    %1046 = vmatpush.bf16.msra.mxu0 0
    %1047 = vmatpush.bf16.msra.mxu0 0
    %1048 = vmatpush.bf16.msra.mxu0 0
    %1049 = vmatpush.bf16.msra.mxu0 0
    %1050 = vmatpush.bf16.msra.mxu0 0
    %1051 = vmatpush.bf16.msra.mxu0 0
    %1052 = vmatpush.bf16.msra.mxu0 0
    %1053 = vmatpush.bf16.msra.mxu0 %v1005
    %1054 = vmatmul.bf16.gmra.mxu0 %v993
    %v1055 = vpop.f32.mrf.mxu0
    %v1056 = vadd.f32 0.0, %v1055
    %v1057 = vpop.f32.mrf.mxu0
    %1058 = vdwg.mxu0
    %v1059 = vadd.f32 %v954, %v1017
    %v1060 = vadd.f32 %v955, %v1030
    %v1061 = vadd.f32 %v956, %v1043
    %v1062 = vadd.f32 %v957, %v1056
    %1063 = vrot.lane.b32.xlu0 %v255, 111
    %v1064 = vpop.permute.xlu0 %1063
    %1065 = vrot.lane.b32.xlu0 %v256, 111
    %v1066 = vpop.permute.xlu0 %1065
    %1067 = vrot.lane.b32.xlu0 %v257, 111
    %v1068 = vpop.permute.xlu0 %1067
    %1069 = vrot.lane.b32.xlu0 %v258, 111
    %v1070 = vpop.permute.xlu0 %1069
    %vm1071 = vcmp.lt.s32.totalorder %v268, 111
    %v1072 = vsel %vm1071, %v1068, %v1070
    %v1073 = vsel %vm1071, %v1066, %v1068
    %v1074 = vsel %vm1071, %v1064, %v1066
    %v1075 = vsel %vm1071, %v1070, %v1064
    %s1076 = scalar_lea.vmem %s14, 32
    %v1077 = vld [vmem:[%s1076] ss:$8 sm:$0xf]
    %v1079 = vperm.slane %v1077, 0
    %v1080 = vperm.slane %v1077, 1
    %v1081 = vperm.slane %v1077, 2
    %v1082 = vperm.slane %v1077, 3
    %v1087 = vmul.f32 %v1074, %v1079
    %v1088 = vmul.f32 %v1073, %v1080
    %v1089 = vmul.f32 %v1072, %v1081
    %v1090 = vmul.f32 %v1075, %v1082
    %s1091 = scalar_lea.vmem %s5, 32
    %v1092 = vld [vmem:[%s1091] sm:$0xf]
    %v1093 = vpack.c.bf16 %v1087, %v1087
    %v1094 = vpack.c.bf16 %v1088, %v1088
    %v1095 = vpack.c.bf16 %v1089, %v1089
    %v1096 = vpack.c.bf16 %v1090, %v1090
    %v1098 = vsel %vm170, %v1092, 0
    %v1101 = vsel %vm174, %v1093, 0
    %v1104 = vsel %vm174, %v1094, 0
    %v1107 = vsel %vm174, %v1095, 0
    %v1110 = vsel %vm174, %v1096, 0
    %1112 = vmatpush.bf16.msra.mxu0 0
    %1113 = vmatpush.bf16.msra.mxu0 0
    %1114 = vmatpush.bf16.msra.mxu0 0
    %1115 = vmatpush.bf16.msra.mxu0 0
    %1116 = vmatpush.bf16.msra.mxu0 0
    %1117 = vmatpush.bf16.msra.mxu0 0
    %1118 = vmatpush.bf16.msra.mxu0 0
    %1119 = vmatpush.bf16.msra.mxu0 %v1101
    %1120 = vmatmul.bf16.gmra.mxu0 %v1098
    %v1121 = vpop.f32.mrf.mxu0
    %v1122 = vadd.f32 0.0, %v1121
    %v1123 = vpop.f32.mrf.mxu0
    %1124 = vdwg.mxu0
    %1125 = vmatpush.bf16.msra.mxu0 0
    %1126 = vmatpush.bf16.msra.mxu0 0
    %1127 = vmatpush.bf16.msra.mxu0 0
    %1128 = vmatpush.bf16.msra.mxu0 0
    %1129 = vmatpush.bf16.msra.mxu0 0
    %1130 = vmatpush.bf16.msra.mxu0 0
    %1131 = vmatpush.bf16.msra.mxu0 0
    %1132 = vmatpush.bf16.msra.mxu0 %v1104
    %1133 = vmatmul.bf16.gmra.mxu0 %v1098
    %v1134 = vpop.f32.mrf.mxu0
    %v1135 = vadd.f32 0.0, %v1134
    %v1136 = vpop.f32.mrf.mxu0
    %1137 = vdwg.mxu0
    %1138 = vmatpush.bf16.msra.mxu0 0
    %1139 = vmatpush.bf16.msra.mxu0 0
    %1140 = vmatpush.bf16.msra.mxu0 0
    %1141 = vmatpush.bf16.msra.mxu0 0
    %1142 = vmatpush.bf16.msra.mxu0 0
    %1143 = vmatpush.bf16.msra.mxu0 0
    %1144 = vmatpush.bf16.msra.mxu0 0
    %1145 = vmatpush.bf16.msra.mxu0 %v1107
    %1146 = vmatmul.bf16.gmra.mxu0 %v1098
    %v1147 = vpop.f32.mrf.mxu0
    %v1148 = vadd.f32 0.0, %v1147
    %v1149 = vpop.f32.mrf.mxu0
    %1150 = vdwg.mxu0
    %1151 = vmatpush.bf16.msra.mxu0 0
    %1152 = vmatpush.bf16.msra.mxu0 0
    %1153 = vmatpush.bf16.msra.mxu0 0
    %1154 = vmatpush.bf16.msra.mxu0 0
    %1155 = vmatpush.bf16.msra.mxu0 0
    %1156 = vmatpush.bf16.msra.mxu0 0
    %1157 = vmatpush.bf16.msra.mxu0 0
    %1158 = vmatpush.bf16.msra.mxu0 %v1110
    %1159 = vmatmul.bf16.gmra.mxu0 %v1098
    %v1160 = vpop.f32.mrf.mxu0
    %v1161 = vadd.f32 0.0, %v1160
    %v1162 = vpop.f32.mrf.mxu0
    %1163 = vdwg.mxu0
    %v1164 = vadd.f32 %v1059, %v1122
    %v1165 = vadd.f32 %v1060, %v1135
    %v1166 = vadd.f32 %v1061, %v1148
    %v1167 = vadd.f32 %v1062, %v1161
    %v1168 = vld [vmem:[%s6] sm:$0xff]
    %1170 = vset.pattern.permute.xlu0 0
    %1171 = vperm.xlu0 %1170, %v1168
    %v1172 = vpop.permute.xlu0 %1171
    %v1174 = vadd.f32 %v1164, %v1172
    %v1175 = vadd.f32 %v1165, %v1172
    %v1176 = vadd.f32 %v1166, %v1172
    %v1177 = vadd.f32 %v1167, %v1172
    %v1178 = vadd.f32 %v1174, 3.0
    %v1179 = vadd.f32 %v1175, 3.0
    %v1180 = vadd.f32 %v1176, 3.0
    %v1181 = vadd.f32 %v1177, 3.0
    %v1182 = vmax.f32 %v1178, 0.0
    %v1183 = vmax.f32 %v1179, 0.0
    %v1184 = vmax.f32 %v1180, 0.0
    %v1185 = vmax.f32 %v1181, 0.0
    %v1186 = vmin.f32 %v1182, 6.0
    %v1187 = vmin.f32 %v1183, 6.0
    %v1188 = vmin.f32 %v1184, 6.0
    %v1189 = vmin.f32 %v1185, 6.0
    %v1190 = vmul.f32 %v1174, %v1186
    %v1191 = vmul.f32 %v1175, %v1187
    %v1192 = vmul.f32 %v1176, %v1188
    %v1193 = vmul.f32 %v1177, %v1189
    %v1194 = vmul.f32 %v1190, 0.16666667
    %v1195 = vmul.f32 %v1191, 0.16666667
    %v1196 = vmul.f32 %v1192, 0.16666667
    %v1197 = vmul.f32 %v1193, 0.16666667
    %v1198 = vadd.f32 %v155, %v1194
    %v1199 = vadd.f32 %v156, %v1195
    %v1200 = vadd.f32 %v157, %v1196
    %v1201 = vadd.f32 %v158, %v1197
    %v1202 = vld [vmem:[%s7] sm:$0xf]
    %v1203 = vpack.c.bf16 %v1198, %v1198
    %v1204 = vpack.c.bf16 %v1199, %v1199
    %v1205 = vpack.c.bf16 %v1200, %v1200
    %v1206 = vpack.c.bf16 %v1201, %v1201
    %v1207 = vld [vmem:[%s8] sm:$0xff]
    %1209 = vset.pattern.permute.xlu0 0
    %1210 = vperm.xlu0 %1209, %v1207
    %v1211 = vpop.permute.xlu0 %1210
    %v1214 = vsel %vm170, %v1202, 0
    %v1217 = vsel %vm174, %v1203, 0
    %v1220 = vsel %vm174, %v1204, 0
    %v1223 = vsel %vm174, %v1205, 0
    %v1226 = vsel %vm174, %v1206, 0
    %1228 = vmatpush.bf16.msra.mxu0 0
    %1229 = vmatpush.bf16.msra.mxu0 0
    %1230 = vmatpush.bf16.msra.mxu0 0
    %1231 = vmatpush.bf16.msra.mxu0 0
    %1232 = vmatpush.bf16.msra.mxu0 0
    %1233 = vmatpush.bf16.msra.mxu0 0
    %1234 = vmatpush.bf16.msra.mxu0 0
    %1235 = vmatpush.bf16.msra.mxu0 %v1217
    %1236 = vmatmul.bf16.gmra.mxu0 %v1214
    %v1237 = vpop.f32.mrf.mxu0
    %v1238 = vadd.f32 %v1211, %v1237
    %v1239 = vpop.f32.mrf.mxu0
    %1240 = vdwg.mxu0
    %1241 = vmatpush.bf16.msra.mxu0 0
    %1242 = vmatpush.bf16.msra.mxu0 0
    %1243 = vmatpush.bf16.msra.mxu0 0
    %1244 = vmatpush.bf16.msra.mxu0 0
    %1245 = vmatpush.bf16.msra.mxu0 0
    %1246 = vmatpush.bf16.msra.mxu0 0
    %1247 = vmatpush.bf16.msra.mxu0 0
    %1248 = vmatpush.bf16.msra.mxu0 %v1220
    %1249 = vmatmul.bf16.gmra.mxu0 %v1214
    %v1250 = vpop.f32.mrf.mxu0
    %v1251 = vadd.f32 %v1211, %v1250
    %v1252 = vpop.f32.mrf.mxu0
    %1253 = vdwg.mxu0
    %1254 = vmatpush.bf16.msra.mxu0 0
    %1255 = vmatpush.bf16.msra.mxu0 0
    %1256 = vmatpush.bf16.msra.mxu0 0
    %1257 = vmatpush.bf16.msra.mxu0 0
    %1258 = vmatpush.bf16.msra.mxu0 0
    %1259 = vmatpush.bf16.msra.mxu0 0
    %1260 = vmatpush.bf16.msra.mxu0 0
    %1261 = vmatpush.bf16.msra.mxu0 %v1223
    %1262 = vmatmul.bf16.gmra.mxu0 %v1214
    %v1263 = vpop.f32.mrf.mxu0
    %v1264 = vadd.f32 %v1211, %v1263
    %v1265 = vpop.f32.mrf.mxu0
    %1266 = vdwg.mxu0
    %1267 = vmatpush.bf16.msra.mxu0 0
    %1268 = vmatpush.bf16.msra.mxu0 0
    %1269 = vmatpush.bf16.msra.mxu0 0
    %1270 = vmatpush.bf16.msra.mxu0 0
    %1271 = vmatpush.bf16.msra.mxu0 0
    %1272 = vmatpush.bf16.msra.mxu0 0
    %1273 = vmatpush.bf16.msra.mxu0 0
    %1274 = vmatpush.bf16.msra.mxu0 %v1226
    %1275 = vmatmul.bf16.gmra.mxu0 %v1214
    %v1276 = vpop.f32.mrf.mxu0
    %v1277 = vadd.f32 %v1211, %v1276
    %v1278 = vpop.f32.mrf.mxu0
    %1279 = vdwg.mxu0
    %v1280 = vld [vmem:[%s9] sm:$0xf]
    %v1281 = vld [vmem:[%s10] sm:$0xff]
    %1283 = vset.pattern.permute.xlu0 0
    %1284 = vperm.xlu0 %1283, %v1281
    %v1285 = vpop.permute.xlu0 %1284
    %v1288 = vsel %vm83, %v1280, 0
    %1290 = vmatpush.bf16.msra.mxu0 0
    %1291 = vmatpush.bf16.msra.mxu0 0
    %1292 = vmatpush.bf16.msra.mxu0 0
    %1293 = vmatpush.bf16.msra.mxu0 0
    %1294 = vmatpush.bf16.msra.mxu0 0
    %1295 = vmatpush.bf16.msra.mxu0 0
    %1296 = vmatpush.bf16.msra.mxu0 0
    %1297 = vmatpush.bf16.msra.mxu0 %v75
    %1298 = vmatmul.bf16.gmra.mxu0 %v1288
    %v1299 = vpop.f32.mrf.mxu0
    %v1300 = vadd.f32 %v1285, %v1299
    %v1301 = vpop.f32.mrf.mxu0
    %1302 = vdwg.mxu0
    %1303 = vmatpush.bf16.msra.mxu0 0
    %1304 = vmatpush.bf16.msra.mxu0 0
    %1305 = vmatpush.bf16.msra.mxu0 0
    %1306 = vmatpush.bf16.msra.mxu0 0
    %1307 = vmatpush.bf16.msra.mxu0 0
    %1308 = vmatpush.bf16.msra.mxu0 0
    %1309 = vmatpush.bf16.msra.mxu0 0
    %1310 = vmatpush.bf16.msra.mxu0 %v76
    %1311 = vmatmul.bf16.gmra.mxu0 %v1288
    %v1312 = vpop.f32.mrf.mxu0
    %v1313 = vadd.f32 %v1285, %v1312
    %v1314 = vpop.f32.mrf.mxu0
    %1315 = vdwg.mxu0
    %1316 = vmatpush.bf16.msra.mxu0 0
    %1317 = vmatpush.bf16.msra.mxu0 0
    %1318 = vmatpush.bf16.msra.mxu0 0
    %1319 = vmatpush.bf16.msra.mxu0 0
    %1320 = vmatpush.bf16.msra.mxu0 0
    %1321 = vmatpush.bf16.msra.mxu0 0
    %1322 = vmatpush.bf16.msra.mxu0 0
    %1323 = vmatpush.bf16.msra.mxu0 %v77
    %1324 = vmatmul.bf16.gmra.mxu0 %v1288
    %v1325 = vpop.f32.mrf.mxu0
    %v1326 = vadd.f32 %v1285, %v1325
    %v1327 = vpop.f32.mrf.mxu0
    %1328 = vdwg.mxu0
    %1329 = vmatpush.bf16.msra.mxu0 0
    %1330 = vmatpush.bf16.msra.mxu0 0
    %1331 = vmatpush.bf16.msra.mxu0 0
    %1332 = vmatpush.bf16.msra.mxu0 0
    %1333 = vmatpush.bf16.msra.mxu0 0
    %1334 = vmatpush.bf16.msra.mxu0 0
    %1335 = vmatpush.bf16.msra.mxu0 0
    %1336 = vmatpush.bf16.msra.mxu0 %v78
    %1337 = vmatmul.bf16.gmra.mxu0 %v1288
    %v1338 = vpop.f32.mrf.mxu0
    %v1339 = vadd.f32 %v1285, %v1338
    %v1340 = vpop.f32.mrf.mxu0
    %1341 = vdwg.mxu0
    %v1342 = vmul.f32 %v1238, 0.1
    %v1343 = vmul.f32 %v1251, 0.1
    %v1344 = vmul.f32 %v1264, 0.1
    %v1345 = vmul.f32 %v1277, 0.1
    %v1346 = vmax.f32 %v1238, %v1342
    %v1347 = vmax.f32 %v1251, %v1343
    %v1348 = vmax.f32 %v1264, %v1344
    %v1349 = vmax.f32 %v1277, %v1345
    %v1350 = vmul.f32 %v1300, 0.1
    %v1351 = vmul.f32 %v1313, 0.1
    %v1352 = vmul.f32 %v1326, 0.1
    %v1353 = vmul.f32 %v1339, 0.1
    %v1354 = vmax.f32 %v1300, %v1350
    %v1355 = vmax.f32 %v1313, %v1351
    %v1356 = vmax.f32 %v1326, %v1352
    %v1357 = vmax.f32 %v1339, %v1353
    %v1358 = vld [vmem:[%s11] sm:$0xf]
    %v1359 = vld [vmem:[%s11 + $0x4] sm:$0xf]
    %v1360 = vpack.c.bf16 %v1346, %v1346
    %v1361 = vpack.c.bf16 %v1347, %v1347
    %v1362 = vpack.c.bf16 %v1348, %v1348
    %v1363 = vpack.c.bf16 %v1349, %v1349
    %v1364 = vld [vmem:[%s12] sm:$0xf]
    %v1365 = vld [vmem:[%s12 + $0x4] sm:$0xf]
    %v1366 = vpack.c.bf16 %v1354, %v1354
    %v1367 = vpack.c.bf16 %v1355, %v1355
    %v1368 = vpack.c.bf16 %v1356, %v1356
    %v1369 = vpack.c.bf16 %v1357, %v1357
    %v1372 = vunpack.c.l.b16 %v1364
    %v1373 = vunpack.c.l.b16 %v1365
    %v1374 = vpack.c.b16 %v1373, %v1372
    %v1376 = vsel %vm170, %v1374, 0
    %v1379 = vsel %vm174, %v1366, 0
    %v1382 = vsel %vm174, %v1367, 0
    %v1385 = vsel %vm174, %v1368, 0
    %v1388 = vsel %vm174, %v1369, 0
    %1390 = vmatpush.bf16.msra.mxu0 0
    %1391 = vmatpush.bf16.msra.mxu0 0
    %1392 = vmatpush.bf16.msra.mxu0 0
    %1393 = vmatpush.bf16.msra.mxu0 0
    %1394 = vmatpush.bf16.msra.mxu0 0
    %1395 = vmatpush.bf16.msra.mxu0 0
    %1396 = vmatpush.bf16.msra.mxu0 0
    %1397 = vmatpush.bf16.msra.mxu0 %v1379
    %1398 = vmatmul.bf16.gmra.mxu0 %v1376
    %v1399 = vpop.f32.mrf.mxu0
    %v1400 = vadd.f32 0.0, %v1399
    %v1401 = vpop.f32.mrf.mxu0
    %v1402 = vadd.f32 0.0, %v1401
    %1403 = vdwg.mxu0
    %1404 = vmatpush.bf16.msra.mxu0 0
    %1405 = vmatpush.bf16.msra.mxu0 0
    %1406 = vmatpush.bf16.msra.mxu0 0
    %1407 = vmatpush.bf16.msra.mxu0 0
    %1408 = vmatpush.bf16.msra.mxu0 0
    %1409 = vmatpush.bf16.msra.mxu0 0
    %1410 = vmatpush.bf16.msra.mxu0 0
    %1411 = vmatpush.bf16.msra.mxu0 %v1382
    %1412 = vmatmul.bf16.gmra.mxu0 %v1376
    %v1413 = vpop.f32.mrf.mxu0
    %v1414 = vadd.f32 0.0, %v1413
    %v1415 = vpop.f32.mrf.mxu0
    %v1416 = vadd.f32 0.0, %v1415
    %1417 = vdwg.mxu0
    %1418 = vmatpush.bf16.msra.mxu0 0
    %1419 = vmatpush.bf16.msra.mxu0 0
    %1420 = vmatpush.bf16.msra.mxu0 0
    %1421 = vmatpush.bf16.msra.mxu0 0
    %1422 = vmatpush.bf16.msra.mxu0 0
    %1423 = vmatpush.bf16.msra.mxu0 0
    %1424 = vmatpush.bf16.msra.mxu0 0
    %1425 = vmatpush.bf16.msra.mxu0 %v1385
    %1426 = vmatmul.bf16.gmra.mxu0 %v1376
    %v1427 = vpop.f32.mrf.mxu0
    %v1428 = vadd.f32 0.0, %v1427
    %v1429 = vpop.f32.mrf.mxu0
    %v1430 = vadd.f32 0.0, %v1429
    %1431 = vdwg.mxu0
    %1432 = vmatpush.bf16.msra.mxu0 0
    %1433 = vmatpush.bf16.msra.mxu0 0
    %1434 = vmatpush.bf16.msra.mxu0 0
    %1435 = vmatpush.bf16.msra.mxu0 0
    %1436 = vmatpush.bf16.msra.mxu0 0
    %1437 = vmatpush.bf16.msra.mxu0 0
    %1438 = vmatpush.bf16.msra.mxu0 0
    %1439 = vmatpush.bf16.msra.mxu0 %v1388
    %1440 = vmatmul.bf16.gmra.mxu0 %v1376
    %v1441 = vpop.f32.mrf.mxu0
    %v1442 = vadd.f32 0.0, %v1441
    %v1443 = vpop.f32.mrf.mxu0
    %v1444 = vadd.f32 0.0, %v1443
    %1445 = vdwg.mxu0
    %v1448 = vunpack.c.l.b16 %v1358
    %v1449 = vunpack.c.l.b16 %v1359
    %v1450 = vpack.c.b16 %v1449, %v1448
    %v1452 = vsel %vm170, %v1450, 0
    %v1455 = vsel %vm174, %v1360, 0
    %v1458 = vsel %vm174, %v1361, 0
    %v1461 = vsel %vm174, %v1362, 0
    %v1464 = vsel %vm174, %v1363, 0
    %1466 = vmatpush.bf16.msra.mxu0 0
    %1467 = vmatpush.bf16.msra.mxu0 0
    %1468 = vmatpush.bf16.msra.mxu0 0
    %1469 = vmatpush.bf16.msra.mxu0 0
    %1470 = vmatpush.bf16.msra.mxu0 0
    %1471 = vmatpush.bf16.msra.mxu0 0
    %1472 = vmatpush.bf16.msra.mxu0 0
    %1473 = vmatpush.bf16.msra.mxu0 %v1455
    %1474 = vmatmul.bf16.gmra.mxu0 %v1452
    %v1475 = vpop.f32.mrf.mxu0
    %v1476 = vadd.f32 %v1400, %v1475
    %v1477 = vpop.f32.mrf.mxu0
    %v1478 = vadd.f32 %v1402, %v1477
    %1479 = vdwg.mxu0
    %1480 = vmatpush.bf16.msra.mxu0 0
    %1481 = vmatpush.bf16.msra.mxu0 0
    %1482 = vmatpush.bf16.msra.mxu0 0
    %1483 = vmatpush.bf16.msra.mxu0 0
    %1484 = vmatpush.bf16.msra.mxu0 0
    %1485 = vmatpush.bf16.msra.mxu0 0
    %1486 = vmatpush.bf16.msra.mxu0 0
    %1487 = vmatpush.bf16.msra.mxu0 %v1458
    %1488 = vmatmul.bf16.gmra.mxu0 %v1452
    %v1489 = vpop.f32.mrf.mxu0
    %v1490 = vadd.f32 %v1414, %v1489
    %v1491 = vpop.f32.mrf.mxu0
    %v1492 = vadd.f32 %v1416, %v1491
    %1493 = vdwg.mxu0
    %1494 = vmatpush.bf16.msra.mxu0 0
    %1495 = vmatpush.bf16.msra.mxu0 0
    %1496 = vmatpush.bf16.msra.mxu0 0
    %1497 = vmatpush.bf16.msra.mxu0 0
    %1498 = vmatpush.bf16.msra.mxu0 0
    %1499 = vmatpush.bf16.msra.mxu0 0
    %1500 = vmatpush.bf16.msra.mxu0 0
    %1501 = vmatpush.bf16.msra.mxu0 %v1461
    %1502 = vmatmul.bf16.gmra.mxu0 %v1452
    %v1503 = vpop.f32.mrf.mxu0
    %v1504 = vadd.f32 %v1428, %v1503
    %v1505 = vpop.f32.mrf.mxu0
    %v1506 = vadd.f32 %v1430, %v1505
    %1507 = vdwg.mxu0
    %1508 = vmatpush.bf16.msra.mxu0 0
    %1509 = vmatpush.bf16.msra.mxu0 0
    %1510 = vmatpush.bf16.msra.mxu0 0
    %1511 = vmatpush.bf16.msra.mxu0 0
    %1512 = vmatpush.bf16.msra.mxu0 0
    %1513 = vmatpush.bf16.msra.mxu0 0
    %1514 = vmatpush.bf16.msra.mxu0 0
    %1515 = vmatpush.bf16.msra.mxu0 %v1464
    %1516 = vmatmul.bf16.gmra.mxu0 %v1452
    %v1517 = vpop.f32.mrf.mxu0
    %v1518 = vadd.f32 %v1442, %v1517
    %v1519 = vpop.f32.mrf.mxu0
    %v1520 = vadd.f32 %v1444, %v1519
    %1521 = vdwg.mxu0
    %v1522 = vld [vmem:[%s13] sm:$0xff]
    %v1523 = vld [vmem:[%s13 + $0x8] sm:$0xff]
    %1525 = vset.pattern.permute.xlu0 0
    %1526 = vperm.xlu0 %1525, %v1522
    %v1527 = vpop.permute.xlu0 %1526
    %1530 = vset.pattern.permute.xlu0 0
    %1531 = vperm.xlu0 %1530, %v1523
    %v1532 = vpop.permute.xlu0 %1531
    %v1534 = vadd.f32 %v1476, %v1527
    %v1535 = vadd.f32 %v1490, %v1527
    %v1536 = vadd.f32 %v1504, %v1527
    %v1537 = vadd.f32 %v1518, %v1527
    %v1538 = vadd.f32 %v1478, %v1532
    %v1539 = vadd.f32 %v1492, %v1532
    %v1540 = vadd.f32 %v1506, %v1532
    %v1541 = vadd.f32 %v1520, %v1532
    %v1542 = vadd.f32 %v1534, 3.0
    %v1543 = vadd.f32 %v1535, 3.0
    %v1544 = vadd.f32 %v1536, 3.0
    %v1545 = vadd.f32 %v1537, 3.0
    %v1546 = vadd.f32 %v1538, 3.0
    %v1547 = vadd.f32 %v1539, 3.0
    %v1548 = vadd.f32 %v1540, 3.0
    %v1549 = vadd.f32 %v1541, 3.0
    %v1550 = vmax.f32 %v1542, 0.0
    %v1551 = vmax.f32 %v1543, 0.0
    %v1552 = vmax.f32 %v1544, 0.0
    %v1553 = vmax.f32 %v1545, 0.0
    %v1554 = vmax.f32 %v1546, 0.0
    %v1555 = vmax.f32 %v1547, 0.0
    %v1556 = vmax.f32 %v1548, 0.0
    %v1557 = vmax.f32 %v1549, 0.0
    %v1558 = vmin.f32 %v1550, 6.0
    %v1559 = vmin.f32 %v1551, 6.0
    %v1560 = vmin.f32 %v1552, 6.0
    %v1561 = vmin.f32 %v1553, 6.0
    %v1562 = vmin.f32 %v1554, 6.0
    %v1563 = vmin.f32 %v1555, 6.0
    %v1564 = vmin.f32 %v1556, 6.0
    %v1565 = vmin.f32 %v1557, 6.0
    %v1566 = vmul.f32 %v1534, %v1558
    %v1567 = vmul.f32 %v1535, %v1559
    %v1568 = vmul.f32 %v1536, %v1560
    %v1569 = vmul.f32 %v1537, %v1561
    %v1570 = vmul.f32 %v1538, %v1562
    %v1571 = vmul.f32 %v1539, %v1563
    %v1572 = vmul.f32 %v1540, %v1564
    %v1573 = vmul.f32 %v1541, %v1565
    %v1574 = vmul.f32 %v1566, 0.16666667
    %v1575 = vmul.f32 %v1567, 0.16666667
    %v1576 = vmul.f32 %v1568, 0.16666667
    %v1577 = vmul.f32 %v1569, 0.16666667
    %v1578 = vmul.f32 %v1570, 0.16666667
    %v1579 = vmul.f32 %v1571, 0.16666667
    %v1580 = vmul.f32 %v1572, 0.16666667
    %v1581 = vmul.f32 %v1573, 0.16666667
    %1582 = vst [vmem:[#allocation2] sm:$0xff] %v1574
    %1583 = vst [vmem:[#allocation2 + $0x8] sm:$0xff] %v1575
    %1584 = vst [vmem:[#allocation2 + $0x10] sm:$0xff] %v1576
    %1585 = vst [vmem:[#allocation2 + $0x18] sm:$0xff] %v1577
    %1586 = vst [vmem:[#allocation2 + $0x20] sm:$0xff] %v1578
    %1587 = vst [vmem:[#allocation2 + $0x28] sm:$0xff] %v1579
    %1588 = vst [vmem:[#allocation2 + $0x30] sm:$0xff] %v1580
    %1589 = vst [vmem:[#allocation2 + $0x38] sm:$0xff] %v1581
    // Predicated region
    $region62: #{tpu_custom_call.1} parent=1 // pred_check
      _
    $region63: #{tpu_custom_call.1} parent=1 // pred_check_branch
      %1591 = sbr.rel (0) target = $region65
    $region64: #{tpu_custom_call.1} parent=1 // pred_region
      %1593 = vsyncadd [#allocation3], 0
      %s1594 = sshll.u32 [#allocation2], 4
      %s1595 = int_to_ptr.vmem [resolvable:$true] %s1594
      %s1596 = sshll.u32 %s15, 4
      %s1597 = int_to_ptr.hbm [resolvable:$true] %s1596
      %1602 = dma.vmem_to_hbm [thread:$0]  %s1595, 1024, %s1597, [#allocation3], 512, 512, 32
    $region65: #{tpu_custom_call.1} parent=1 // pred_fallthru
      _
    // Predicated region
    $region66: #{tpu_custom_call.1} parent=1 // pred_check
      _
    $region67: #{tpu_custom_call.1} parent=1 // pred_check_branch
      %1604 = sbr.rel (0) target = $region69
    $region68: #{tpu_custom_call.1} parent=1 // pred_region
      %1606 = dma.done [#allocation3], 1024
    $region69: #{tpu_custom_call.1} parent=1 // pred_fallthru
      _
    %1607 = vsyncpa [#allocation3], 1

</llo_original>
